<compile_context>
chip_gen: v6e
topology: v6e:2x2x1
jax: 0.10.0
libtpu: 0.0.40
codegen_flags: <defaults>
</compile_context>

<pallas_src>
import functools

import jax
import jax.numpy as jnp
from jax.experimental import pallas as pl
from jax.experimental.pallas import tpu as pltpu


# Embedded config (documentation only); layer_cfg = [from, repeats, type, args]
CONFIG = {
    "backbone": [
        [-1, 1, "Conv", [8, 4, 1]],     # Conv2d(4 -> 8, k3, s1, p1)
        [-1, 1, "C2f", [8, True]],      # Conv2d(8 -> 8, k3, s1, p1) + BN(8) + ReLU
        [-1, 1, "Conv", [16, 8, 2]],    # Conv2d(8 -> 16, k3, s2, p1)
        [-1, 1, "SPPF", [[8], 16]],     # SPPF(in=16, pool_sizes=[8]) -> 32 channels
    ],
    "head": [
        [-1, 1, "nn.Upsample", [None, 2, "nearest"]],
        [[64], 1, "Detect", [5]],       # Conv2d(64//2 = 32 -> 5, k1)
    ],
}

_TAPS = tuple((dy, dx) for dy in (-1, 0, 1) for dx in (-1, 0, 1))
_CPAD = 8   # each 3x3 tap gets a sublane-aligned 8-row channel slot in the im2col patch


# ----------------------------- fused Pallas kernel ----------------------------------

def _dmodel_kernel(x_ref, m_ref, w1_ref, b1_ref, w2_ref, b2_ref, w3_ref, b3_ref,
                   wd_ref, bd_ref, up_ref, o_ref, p_ref, *, H, W):
    """Entire DModel forward for one batch element, fully resident in VMEM.

    Layout: channels on sublanes, flattened H*W (=256) on lanes.
      x_ref : (1, 4, 256)   input image (flattened NCHW -> no transpose needed)
      m_ref : (9, 256)      per-tap in-image validity masks (0/1)
      w*_ref: (Cout, 72)    im2col-packed 3x3 conv weights (tap-major, 8-padded channels)
      b*_ref: (Cout, 1)     biases (BN already folded into w2/b2)
      wd_ref: (5, 16)       SPPF-concat + Detect 1x1 conv folded weight
      up_ref: (256, 256)    0/1 matrix = stride-2 subsample + nearest 2x upsample
      o_ref : (1, 5, 256)   final output (reshaped to NCHW outside)
      p_ref : (72, 256)     VMEM scratch holding the current im2col patch
    """
    HW = H * W

    def im2col(a, cin):
        # a: (cin, HW). Tap (dy,dx) of a zero-padded 3x3 conv is a cyclic lane roll of
        # the flattened image by -(dy*W+dx) with out-of-image positions masked to 0
        # (the mask also kills every row-boundary / wrap-around contamination).
        for t, (dy, dx) in enumerate(_TAPS):
            shift = (-(dy * W + dx)) % HW
            shifted = a if shift == 0 else pltpu.roll(a, shift, axis=1)
            p_ref[pl.ds(t * _CPAD, cin), :] = shifted * m_ref[pl.ds(t, 1), :]

    # Unused channel rows of the patch must be 0 (conv1 has cin=4 < 8); also guards
    # against NaN patterns in uninitialized VMEM on the first step of each core.
    p_ref[...] = jnp.zeros_like(p_ref)

    x = x_ref[0]                                                        # (4, 256)

    # Conv(4->8, k3, s1, p1): single im2col matmul.
    im2col(x, 4)
    a1 = jnp.dot(w1_ref[...], p_ref[...],
                 preferred_element_type=jnp.float32) + b1_ref[...]      # (8, 256)

    # C2f: Conv(8->8, k3, s1, p1) + BatchNorm (folded into w2/b2) + ReLU.
    im2col(a1, 8)
    a2 = jnp.dot(w2_ref[...], p_ref[...],
                 preferred_element_type=jnp.float32) + b2_ref[...]
    a2 = jnp.maximum(a2, 0.0)                                           # (8, 256)

    # Conv(8->16, k3, s2, p1): evaluated at stride 1; the stride-2 subsample is folded
    # (together with the 2x nearest upsample) into the constant up_ref matmul below.
    im2col(a2, 8)
    a3 = jnp.dot(w3_ref[...], p_ref[...],
                 preferred_element_type=jnp.float32) + b3_ref[...]      # (16, 256)

    # SPPF (identity pool + channel concat) and Detect 1x1 conv folded into wd (5,16);
    # both are pointwise so they commute with the spatial subsample / upsample.
    det = jnp.dot(wd_ref[...], a3,
                  preferred_element_type=jnp.float32) + bd_ref[...]     # (5, 256)

    # stride-2 subsample + nearest 2x upsample as one constant 0/1 spatial matmul.
    o_ref[0] = jnp.dot(det, up_ref[...], preferred_element_type=jnp.float32)


# ----------------------------- host-side folding ------------------------------------

def _fold_and_pack(params, H, W):
    """Fold BN / SPPF / Detect and pack conv weights for the im2col layout.

    Tiny, constant-shaped math; runs under jit and mostly constant-folds.
    """
    HW = H * W

    # Fold BatchNorm (eval mode) into the C2f conv:  (Wx+b)*s + sh == (W*s)x + (b*s+sh)
    s, sh = params["bn_scale"], params["bn_shift"]
    w2f = params["w2"] * s[None, None, None, :]
    b2f = params["b2"] * s + sh

    def pack3x3(w):
        # (3,3,cin,cout) -> (cout, 9*8): column index = tap*8 + ci, channels 0-padded to 8
        kh, kw, cin, cout = w.shape
        wp = jnp.zeros((kh, kw, _CPAD, cout), jnp.float32).at[:, :, :cin, :].set(w)
        return wp.reshape(kh * kw * _CPAD, cout).T

    w1p = pack3x3(params["w1"])
    w2p = pack3x3(w2f)
    w3p = pack3x3(params["w3"])
    b1 = params["b1"].reshape(-1, 1).astype(jnp.float32)
    b2 = b2f.reshape(-1, 1).astype(jnp.float32)
    b3 = params["b3"].reshape(-1, 1).astype(jnp.float32)

    # SPPF fold: adaptive_max_pool2d(x,(8,8)) of the 8x8 map is identity, so
    # Detect(concat([pool(x), x], ch)) == (w[:, :16] + w[:, 16:]) @ x.
    wd = params["w_det"]                                    # (5, 32), torch-style [out,in]
    wde = (wd[:, :16] + wd[:, 16:]).astype(jnp.float32)     # (5, 16)
    bd = params["b_det"].reshape(-1, 1).astype(jnp.float32)

    # Per-tap in-image validity masks for the padded 3x3 conv in flattened layout.
    pp = jnp.arange(HW)
    yy, xx = pp // W, pp % W
    masks = [((yy + dy >= 0) & (yy + dy < H) & (xx + dx >= 0) & (xx + dx < W))
             for dy, dx in _TAPS]
    tap_masks = jnp.stack(masks).astype(jnp.float32)        # (9, HW)

    # stride-2 subsample then nearest 2x upsample == gather on the spatial axis:
    #   out[:, p] = det_full[:, 2*(p//W//2)*W + 2*((p%W)//2)]   -> 0/1 matrix [q, p]
    src = 2 * (yy // 2) * W + 2 * (xx // 2)
    upmat = (src[None, :] == pp[:, None]).astype(jnp.float32)   # (HW, HW)

    return tap_masks, w1p, b1, w2p, b2, w3p, b3, wde, bd, upmat


# ----------------------------- model -------------------------------------------------

def init_params(key):
    ks = jax.random.split(key, 8)
    p = {}
    p["w1"] = jax.random.normal(ks[0], (3, 3, 4, 8), jnp.float32) * 0.1
    p["b1"] = jax.random.normal(ks[1], (8,), jnp.float32) * 0.1
    p["w2"] = jax.random.normal(ks[2], (3, 3, 8, 8), jnp.float32) * 0.1
    p["b2"] = jax.random.normal(ks[3], (8,), jnp.float32) * 0.1
    # BatchNorm2d(8) in eval mode with deterministic, non-trivial running statistics.
    gamma = 1.0 + 0.1 * jnp.arange(8, dtype=jnp.float32)
    beta = 0.05 * jnp.arange(8, dtype=jnp.float32)
    rmean = 0.01 * jnp.arange(8, dtype=jnp.float32)
    rvar = 1.0 + 0.02 * jnp.arange(8, dtype=jnp.float32)
    scale = gamma / jnp.sqrt(rvar + 1e-5)
    p["bn_scale"] = scale
    p["bn_shift"] = beta - rmean * scale
    p["w3"] = jax.random.normal(ks[4], (3, 3, 8, 16), jnp.float32) * 0.1
    p["b3"] = jax.random.normal(ks[5], (16,), jnp.float32) * 0.1
    p["w_det"] = jax.random.normal(ks[6], (5, 32), jnp.float32) * 0.1   # Conv2d(32->5,k1)
    p["b_det"] = jax.random.normal(ks[7], (5,), jnp.float32) * 0.1
    return p


@jax.jit
def dmodel_forward(params, x_nchw):
    N, Cin, H, W = x_nchw.shape
    assert (Cin, H, W) == (4, 16, 16), "embedded config assumes (4,16,16) inputs"
    HW = H * W

    # NCHW -> (N, C, H*W): channels on sublanes, spatial on lanes (reshape only).
    x = x_nchw.reshape(N, Cin, HW).astype(jnp.float32)
    consts = _fold_and_pack(params, H, W)

    kernel = functools.partial(_dmodel_kernel, H=H, W=W)

    def wspec(shape):
        return pl.BlockSpec(shape, lambda n: (0,) * len(shape))

    out = pl.pallas_call(
        kernel,
        out_shape=jax.ShapeDtypeStruct((N, 5, HW), jnp.float32),
        grid=(N,),
        in_specs=[
            pl.BlockSpec((1, Cin, HW), lambda n: (n, 0, 0)),   # input image
            wspec((9, HW)),                                    # tap masks
            wspec((8, 9 * _CPAD)), wspec((8, 1)),              # conv1
            wspec((8, 9 * _CPAD)), wspec((8, 1)),              # C2f conv (+BN folded)
            wspec((16, 9 * _CPAD)), wspec((16, 1)),            # stride-2 conv
            wspec((5, 16)), wspec((5, 1)),                     # SPPF + Detect folded
            wspec((HW, HW)),                                   # subsample+upsample matrix
        ],
        out_specs=pl.BlockSpec((1, 5, HW), lambda n: (n, 0, 0)),
        scratch_shapes=[pltpu.VMEM((9 * _CPAD, HW), jnp.float32)],
        compiler_params=pltpu.CompilerParams(dimension_semantics=("parallel",)),
    )(x, *consts)

    # (N, 5, H*W) -> NCHW (reshape only, no transpose).
    return out.reshape(N, 5, H, W)


if __name__ == "__main__":
    key = jax.random.PRNGKey(0)
    pkey, xkey = jax.random.split(key)
    params = init_params(pkey)
    x = jax.random.normal(xkey, (2, 4, 16, 16), jnp.float32)   # NCHW input

    out = dmodel_forward(params, x)
    jax.block_until_ready(out)
    assert out.shape == (2, 5, 16, 16), out.shape
    print("KERNEL_OK")
</pallas_src>

<mosaic_0001>
module attributes {stable_mosaic.version = 11 : i64} {
  func.func @_dmodel_kernel(%arg0: i32, %arg1: memref<1x4x256xf32, #tpu.memory_space<vmem>>, %arg2: memref<9x256xf32, #tpu.memory_space<vmem>>, %arg3: memref<8x72xf32, #tpu.memory_space<vmem>>, %arg4: memref<8x1xf32, #tpu.memory_space<vmem>>, %arg5: memref<8x72xf32, #tpu.memory_space<vmem>>, %arg6: memref<8x1xf32, #tpu.memory_space<vmem>>, %arg7: memref<16x72xf32, #tpu.memory_space<vmem>>, %arg8: memref<16x1xf32, #tpu.memory_space<vmem>>, %arg9: memref<5x16xf32, #tpu.memory_space<vmem>>, %arg10: memref<5x1xf32, #tpu.memory_space<vmem>>, %arg11: memref<256x256xf32, #tpu.memory_space<vmem>>, %arg12: memref<1x5x256xf32, #tpu.memory_space<vmem>>, %arg13: memref<72x256xf32, #tpu.memory_space<vmem>>) attributes {dimension_semantics = [#tpu.dimension_semantics<parallel>], iteration_bounds = array<i64: 2>, scalar_prefetch = 0 : i64, scratch_operands = 1 : i64, tpu.core_type = #tpu.core_type<tc>, window_params = [{transform_indices = @transform_0, window_bounds = array<i64: 1, 4, 256>}, {pipeline_mode = #tpu.pipeline_mode<synchronous>, transform_indices = @transform_1, window_bounds = array<i64: 9, 256>}, {pipeline_mode = #tpu.pipeline_mode<synchronous>, transform_indices = @transform_2, window_bounds = array<i64: 8, 72>}, {pipeline_mode = #tpu.pipeline_mode<synchronous>, transform_indices = @transform_3, window_bounds = array<i64: 8, 1>}, {pipeline_mode = #tpu.pipeline_mode<synchronous>, transform_indices = @transform_4, window_bounds = array<i64: 8, 72>}, {pipeline_mode = #tpu.pipeline_mode<synchronous>, transform_indices = @transform_5, window_bounds = array<i64: 8, 1>}, {pipeline_mode = #tpu.pipeline_mode<synchronous>, transform_indices = @transform_6, window_bounds = array<i64: 16, 72>}, {pipeline_mode = #tpu.pipeline_mode<synchronous>, transform_indices = @transform_7, window_bounds = array<i64: 16, 1>}, {pipeline_mode = #tpu.pipeline_mode<synchronous>, transform_indices = @transform_8, window_bounds = array<i64: 5, 16>}, {pipeline_mode = #tpu.pipeline_mode<synchronous>, transform_indices = @transform_9, window_bounds = array<i64: 5, 1>}, {pipeline_mode = #tpu.pipeline_mode<synchronous>, transform_indices = @transform_10, window_bounds = array<i64: 256, 256>}, {transform_indices = @transform_11, window_bounds = array<i64: 1, 5, 256>}]} {
    %cst = arith.constant 0.000000e+00 : f32
    %0 = vector.broadcast %cst : f32 to vector<72x256xf32>
    %c0 = arith.constant 0 : index
    %c0_0 = arith.constant 0 : index
    %1 = vector.load %arg13[%c0, %c0_0] : memref<72x256xf32, #tpu.memory_space<vmem>>, vector<72x256xf32>
    tpu.vector_store %arg13[%c0, %c0_0], %0 {strides = array<i32>} : memref<72x256xf32, #tpu.memory_space<vmem>>, vector<72x256xf32>,
    %c0_1 = arith.constant 0 : index
    %c0_2 = arith.constant 0 : index
    %c0_3 = arith.constant 0 : index
    %2 = vector.load %arg1[%c0_1, %c0_2, %c0_3] : memref<1x4x256xf32, #tpu.memory_space<vmem>>, vector<1x4x256xf32>
    %3 = vector.shape_cast %2 : vector<1x4x256xf32> to vector<4x256xf32>
    %c17_i32 = arith.constant 17 : i32
    %4 = tpu.dynamic_rotate %3 by %c17_i32 dim 1 : vector<4x256xf32>, i32 -> vector<4x256xf32>
    %c0_4 = arith.constant 0 : index
    %c0_5 = arith.constant 0 : index
    %5 = vector.load %arg2[%c0_4, %c0_5] : memref<9x256xf32, #tpu.memory_space<vmem>>, vector<1x256xf32>
    %6 = vector.broadcast %5 : vector<1x256xf32> to vector<4x256xf32>
    %7 = arith.mulf %4, %6 : vector<4x256xf32>
    %c0_6 = arith.constant 0 : index
    %c0_7 = arith.constant 0 : index
    %8 = vector.load %arg13[%c0_6, %c0_7] : memref<72x256xf32, #tpu.memory_space<vmem>>, vector<4x256xf32>
    tpu.vector_store %arg13[%c0_6, %c0_7], %7 {strides = array<i32>} : memref<72x256xf32, #tpu.memory_space<vmem>>, vector<4x256xf32>,
    %c16_i32 = arith.constant 16 : i32
    %9 = tpu.dynamic_rotate %3 by %c16_i32 dim 1 : vector<4x256xf32>, i32 -> vector<4x256xf32>
    %c1 = arith.constant 1 : index
    %c0_8 = arith.constant 0 : index
    %10 = vector.load %arg2[%c1, %c0_8] : memref<9x256xf32, #tpu.memory_space<vmem>>, vector<1x256xf32>
    %11 = vector.broadcast %10 : vector<1x256xf32> to vector<4x256xf32>
    %12 = arith.mulf %9, %11 : vector<4x256xf32>
    %c8 = arith.constant 8 : index
    %c0_9 = arith.constant 0 : index
    %13 = vector.load %arg13[%c8, %c0_9] : memref<72x256xf32, #tpu.memory_space<vmem>>, vector<4x256xf32>
    tpu.vector_store %arg13[%c8, %c0_9], %12 {strides = array<i32>} : memref<72x256xf32, #tpu.memory_space<vmem>>, vector<4x256xf32>,
    %c15_i32 = arith.constant 15 : i32
    %14 = tpu.dynamic_rotate %3 by %c15_i32 dim 1 : vector<4x256xf32>, i32 -> vector<4x256xf32>
    %c2 = arith.constant 2 : index
    %c0_10 = arith.constant 0 : index
    %15 = vector.load %arg2[%c2, %c0_10] : memref<9x256xf32, #tpu.memory_space<vmem>>, vector<1x256xf32>
    %16 = vector.broadcast %15 : vector<1x256xf32> to vector<4x256xf32>
    %17 = arith.mulf %14, %16 : vector<4x256xf32>
    %c16 = arith.constant 16 : index
    %c0_11 = arith.constant 0 : index
    %18 = vector.load %arg13[%c16, %c0_11] : memref<72x256xf32, #tpu.memory_space<vmem>>, vector<4x256xf32>
    tpu.vector_store %arg13[%c16, %c0_11], %17 {strides = array<i32>} : memref<72x256xf32, #tpu.memory_space<vmem>>, vector<4x256xf32>,
    %c1_i32 = arith.constant 1 : i32
    %19 = tpu.dynamic_rotate %3 by %c1_i32 dim 1 : vector<4x256xf32>, i32 -> vector<4x256xf32>
    %c3 = arith.constant 3 : index
    %c0_12 = arith.constant 0 : index
    %20 = vector.load %arg2[%c3, %c0_12] : memref<9x256xf32, #tpu.memory_space<vmem>>, vector<1x256xf32>
    %21 = vector.broadcast %20 : vector<1x256xf32> to vector<4x256xf32>
    %22 = arith.mulf %19, %21 : vector<4x256xf32>
    %c24 = arith.constant 24 : index
    %c0_13 = arith.constant 0 : index
    %23 = vector.load %arg13[%c24, %c0_13] : memref<72x256xf32, #tpu.memory_space<vmem>>, vector<4x256xf32>
    tpu.vector_store %arg13[%c24, %c0_13], %22 {strides = array<i32>} : memref<72x256xf32, #tpu.memory_space<vmem>>, vector<4x256xf32>,
    %c4 = arith.constant 4 : index
    %c0_14 = arith.constant 0 : index
    %24 = vector.load %arg2[%c4, %c0_14] : memref<9x256xf32, #tpu.memory_space<vmem>>, vector<1x256xf32>
    %25 = vector.broadcast %24 : vector<1x256xf32> to vector<4x256xf32>
    %26 = arith.mulf %3, %25 : vector<4x256xf32>
    %c32 = arith.constant 32 : index
    %c0_15 = arith.constant 0 : index
    %27 = vector.load %arg13[%c32, %c0_15] : memref<72x256xf32, #tpu.memory_space<vmem>>, vector<4x256xf32>
    tpu.vector_store %arg13[%c32, %c0_15], %26 {strides = array<i32>} : memref<72x256xf32, #tpu.memory_space<vmem>>, vector<4x256xf32>,
    %c255_i32 = arith.constant 255 : i32
    %28 = tpu.dynamic_rotate %3 by %c255_i32 dim 1 : vector<4x256xf32>, i32 -> vector<4x256xf32>
    %c5 = arith.constant 5 : index
    %c0_16 = arith.constant 0 : index
    %29 = vector.load %arg2[%c5, %c0_16] : memref<9x256xf32, #tpu.memory_space<vmem>>, vector<1x256xf32>
    %30 = vector.broadcast %29 : vector<1x256xf32> to vector<4x256xf32>
    %31 = arith.mulf %28, %30 : vector<4x256xf32>
    %c40 = arith.constant 40 : index
    %c0_17 = arith.constant 0 : index
    %32 = vector.load %arg13[%c40, %c0_17] : memref<72x256xf32, #tpu.memory_space<vmem>>, vector<4x256xf32>
    tpu.vector_store %arg13[%c40, %c0_17], %31 {strides = array<i32>} : memref<72x256xf32, #tpu.memory_space<vmem>>, vector<4x256xf32>,
    %c241_i32 = arith.constant 241 : i32
    %33 = tpu.dynamic_rotate %3 by %c241_i32 dim 1 : vector<4x256xf32>, i32 -> vector<4x256xf32>
    %c6 = arith.constant 6 : index
    %c0_18 = arith.constant 0 : index
    %34 = vector.load %arg2[%c6, %c0_18] : memref<9x256xf32, #tpu.memory_space<vmem>>, vector<1x256xf32>
    %35 = vector.broadcast %34 : vector<1x256xf32> to vector<4x256xf32>
    %36 = arith.mulf %33, %35 : vector<4x256xf32>
    %c48 = arith.constant 48 : index
    %c0_19 = arith.constant 0 : index
    %37 = vector.load %arg13[%c48, %c0_19] : memref<72x256xf32, #tpu.memory_space<vmem>>, vector<4x256xf32>
    tpu.vector_store %arg13[%c48, %c0_19], %36 {strides = array<i32>} : memref<72x256xf32, #tpu.memory_space<vmem>>, vector<4x256xf32>,
    %c240_i32 = arith.constant 240 : i32
    %38 = tpu.dynamic_rotate %3 by %c240_i32 dim 1 : vector<4x256xf32>, i32 -> vector<4x256xf32>
    %c7 = arith.constant 7 : index
    %c0_20 = arith.constant 0 : index
    %39 = vector.load %arg2[%c7, %c0_20] : memref<9x256xf32, #tpu.memory_space<vmem>>, vector<1x256xf32>
    %40 = vector.broadcast %39 : vector<1x256xf32> to vector<4x256xf32>
    %41 = arith.mulf %38, %40 : vector<4x256xf32>
    %c56 = arith.constant 56 : index
    %c0_21 = arith.constant 0 : index
    %42 = vector.load %arg13[%c56, %c0_21] : memref<72x256xf32, #tpu.memory_space<vmem>>, vector<4x256xf32>
    tpu.vector_store %arg13[%c56, %c0_21], %41 {strides = array<i32>} : memref<72x256xf32, #tpu.memory_space<vmem>>, vector<4x256xf32>,
    %c239_i32 = arith.constant 239 : i32
    %43 = tpu.dynamic_rotate %3 by %c239_i32 dim 1 : vector<4x256xf32>, i32 -> vector<4x256xf32>
    %c8_22 = arith.constant 8 : index
    %c0_23 = arith.constant 0 : index
    %44 = vector.load %arg2[%c8_22, %c0_23] : memref<9x256xf32, #tpu.memory_space<vmem>>, vector<1x256xf32>
    %45 = vector.broadcast %44 : vector<1x256xf32> to vector<4x256xf32>
    %46 = arith.mulf %43, %45 : vector<4x256xf32>
    %c64 = arith.constant 64 : index
    %c0_24 = arith.constant 0 : index
    %47 = vector.load %arg13[%c64, %c0_24] : memref<72x256xf32, #tpu.memory_space<vmem>>, vector<4x256xf32>
    tpu.vector_store %arg13[%c64, %c0_24], %46 {strides = array<i32>} : memref<72x256xf32, #tpu.memory_space<vmem>>, vector<4x256xf32>,
    %c0_25 = arith.constant 0 : index
    %c0_26 = arith.constant 0 : index
    %48 = vector.load %arg3[%c0_25, %c0_26] : memref<8x72xf32, #tpu.memory_space<vmem>>, vector<8x72xf32>
    %c0_27 = arith.constant 0 : index
    %c0_28 = arith.constant 0 : index
    %49 = vector.load %arg13[%c0_27, %c0_28] : memref<72x256xf32, #tpu.memory_space<vmem>>, vector<72x256xf32>
    %cst_29 = arith.constant dense<0.000000e+00> : vector<8x256xf32>
    %50 = tpu.matmul %48, %49, %cst_29 {dimension_numbers = #tpu.dot_dimension_numbers<[1], [0], [0], [1], [0, 0, 1, 1], [], []>} : vector<8x72xf32>, vector<72x256xf32>, vector<8x256xf32> -> vector<8x256xf32>
    %c0_30 = arith.constant 0 : index
    %c0_31 = arith.constant 0 : index
    %51 = vector.load %arg4[%c0_30, %c0_31] : memref<8x1xf32, #tpu.memory_space<vmem>>, vector<8x1xf32>
    %52 = vector.broadcast %51 : vector<8x1xf32> to vector<8x256xf32>
    %53 = arith.addf %50, %52 : vector<8x256xf32>
    %c17_i32_32 = arith.constant 17 : i32
    %54 = tpu.dynamic_rotate %53 by %c17_i32_32 dim 1 : vector<8x256xf32>, i32 -> vector<8x256xf32>
    %c0_33 = arith.constant 0 : index
    %c0_34 = arith.constant 0 : index
    %55 = vector.load %arg2[%c0_33, %c0_34] : memref<9x256xf32, #tpu.memory_space<vmem>>, vector<1x256xf32>
    %56 = vector.broadcast %55 : vector<1x256xf32> to vector<8x256xf32>
    %57 = arith.mulf %54, %56 : vector<8x256xf32>
    %c0_35 = arith.constant 0 : index
    %c0_36 = arith.constant 0 : index
    %58 = vector.load %arg13[%c0_35, %c0_36] : memref<72x256xf32, #tpu.memory_space<vmem>>, vector<8x256xf32>
    tpu.vector_store %arg13[%c0_35, %c0_36], %57 {strides = array<i32>} : memref<72x256xf32, #tpu.memory_space<vmem>>, vector<8x256xf32>,
    %c16_i32_37 = arith.constant 16 : i32
    %59 = tpu.dynamic_rotate %53 by %c16_i32_37 dim 1 : vector<8x256xf32>, i32 -> vector<8x256xf32>
    %c1_38 = arith.constant 1 : index
    %c0_39 = arith.constant 0 : index
    %60 = vector.load %arg2[%c1_38, %c0_39] : memref<9x256xf32, #tpu.memory_space<vmem>>, vector<1x256xf32>
    %61 = vector.broadcast %60 : vector<1x256xf32> to vector<8x256xf32>
    %62 = arith.mulf %59, %61 : vector<8x256xf32>
    %c8_40 = arith.constant 8 : index
    %c0_41 = arith.constant 0 : index
    %63 = vector.load %arg13[%c8_40, %c0_41] : memref<72x256xf32, #tpu.memory_space<vmem>>, vector<8x256xf32>
    tpu.vector_store %arg13[%c8_40, %c0_41], %62 {strides = array<i32>} : memref<72x256xf32, #tpu.memory_space<vmem>>, vector<8x256xf32>,
    %c15_i32_42 = arith.constant 15 : i32
    %64 = tpu.dynamic_rotate %53 by %c15_i32_42 dim 1 : vector<8x256xf32>, i32 -> vector<8x256xf32>
    %c2_43 = arith.constant 2 : index
    %c0_44 = arith.constant 0 : index
    %65 = vector.load %arg2[%c2_43, %c0_44] : memref<9x256xf32, #tpu.memory_space<vmem>>, vector<1x256xf32>
    %66 = vector.broadcast %65 : vector<1x256xf32> to vector<8x256xf32>
    %67 = arith.mulf %64, %66 : vector<8x256xf32>
    %c16_45 = arith.constant 16 : index
    %c0_46 = arith.constant 0 : index
    %68 = vector.load %arg13[%c16_45, %c0_46] : memref<72x256xf32, #tpu.memory_space<vmem>>, vector<8x256xf32>
    tpu.vector_store %arg13[%c16_45, %c0_46], %67 {strides = array<i32>} : memref<72x256xf32, #tpu.memory_space<vmem>>, vector<8x256xf32>,
    %c1_i32_47 = arith.constant 1 : i32
    %69 = tpu.dynamic_rotate %53 by %c1_i32_47 dim 1 : vector<8x256xf32>, i32 -> vector<8x256xf32>
    %c3_48 = arith.constant 3 : index
    %c0_49 = arith.constant 0 : index
    %70 = vector.load %arg2[%c3_48, %c0_49] : memref<9x256xf32, #tpu.memory_space<vmem>>, vector<1x256xf32>
    %71 = vector.broadcast %70 : vector<1x256xf32> to vector<8x256xf32>
    %72 = arith.mulf %69, %71 : vector<8x256xf32>
    %c24_50 = arith.constant 24 : index
    %c0_51 = arith.constant 0 : index
    %73 = vector.load %arg13[%c24_50, %c0_51] : memref<72x256xf32, #tpu.memory_space<vmem>>, vector<8x256xf32>
    tpu.vector_store %arg13[%c24_50, %c0_51], %72 {strides = array<i32>} : memref<72x256xf32, #tpu.memory_space<vmem>>, vector<8x256xf32>,
    %c4_52 = arith.constant 4 : index
    %c0_53 = arith.constant 0 : index
    %74 = vector.load %arg2[%c4_52, %c0_53] : memref<9x256xf32, #tpu.memory_space<vmem>>, vector<1x256xf32>
    %75 = vector.broadcast %74 : vector<1x256xf32> to vector<8x256xf32>
    %76 = arith.mulf %53, %75 : vector<8x256xf32>
    %c32_54 = arith.constant 32 : index
    %c0_55 = arith.constant 0 : index
    %77 = vector.load %arg13[%c32_54, %c0_55] : memref<72x256xf32, #tpu.memory_space<vmem>>, vector<8x256xf32>
    tpu.vector_store %arg13[%c32_54, %c0_55], %76 {strides = array<i32>} : memref<72x256xf32, #tpu.memory_space<vmem>>, vector<8x256xf32>,
    %c255_i32_56 = arith.constant 255 : i32
    %78 = tpu.dynamic_rotate %53 by %c255_i32_56 dim 1 : vector<8x256xf32>, i32 -> vector<8x256xf32>
    %c5_57 = arith.constant 5 : index
    %c0_58 = arith.constant 0 : index
    %79 = vector.load %arg2[%c5_57, %c0_58] : memref<9x256xf32, #tpu.memory_space<vmem>>, vector<1x256xf32>
    %80 = vector.broadcast %79 : vector<1x256xf32> to vector<8x256xf32>
    %81 = arith.mulf %78, %80 : vector<8x256xf32>
    %c40_59 = arith.constant 40 : index
    %c0_60 = arith.constant 0 : index
    %82 = vector.load %arg13[%c40_59, %c0_60] : memref<72x256xf32, #tpu.memory_space<vmem>>, vector<8x256xf32>
    tpu.vector_store %arg13[%c40_59, %c0_60], %81 {strides = array<i32>} : memref<72x256xf32, #tpu.memory_space<vmem>>, vector<8x256xf32>,
    %c241_i32_61 = arith.constant 241 : i32
    %83 = tpu.dynamic_rotate %53 by %c241_i32_61 dim 1 : vector<8x256xf32>, i32 -> vector<8x256xf32>
    %c6_62 = arith.constant 6 : index
    %c0_63 = arith.constant 0 : index
    %84 = vector.load %arg2[%c6_62, %c0_63] : memref<9x256xf32, #tpu.memory_space<vmem>>, vector<1x256xf32>
    %85 = vector.broadcast %84 : vector<1x256xf32> to vector<8x256xf32>
    %86 = arith.mulf %83, %85 : vector<8x256xf32>
    %c48_64 = arith.constant 48 : index
    %c0_65 = arith.constant 0 : index
    %87 = vector.load %arg13[%c48_64, %c0_65] : memref<72x256xf32, #tpu.memory_space<vmem>>, vector<8x256xf32>
    tpu.vector_store %arg13[%c48_64, %c0_65], %86 {strides = array<i32>} : memref<72x256xf32, #tpu.memory_space<vmem>>, vector<8x256xf32>,
    %c240_i32_66 = arith.constant 240 : i32
    %88 = tpu.dynamic_rotate %53 by %c240_i32_66 dim 1 : vector<8x256xf32>, i32 -> vector<8x256xf32>
    %c7_67 = arith.constant 7 : index
    %c0_68 = arith.constant 0 : index
    %89 = vector.load %arg2[%c7_67, %c0_68] : memref<9x256xf32, #tpu.memory_space<vmem>>, vector<1x256xf32>
    %90 = vector.broadcast %89 : vector<1x256xf32> to vector<8x256xf32>
    %91 = arith.mulf %88, %90 : vector<8x256xf32>
    %c56_69 = arith.constant 56 : index
    %c0_70 = arith.constant 0 : index
    %92 = vector.load %arg13[%c56_69, %c0_70] : memref<72x256xf32, #tpu.memory_space<vmem>>, vector<8x256xf32>
    tpu.vector_store %arg13[%c56_69, %c0_70], %91 {strides = array<i32>} : memref<72x256xf32, #tpu.memory_space<vmem>>, vector<8x256xf32>,
    %c239_i32_71 = arith.constant 239 : i32
    %93 = tpu.dynamic_rotate %53 by %c239_i32_71 dim 1 : vector<8x256xf32>, i32 -> vector<8x256xf32>
    %c8_72 = arith.constant 8 : index
    %c0_73 = arith.constant 0 : index
    %94 = vector.load %arg2[%c8_72, %c0_73] : memref<9x256xf32, #tpu.memory_space<vmem>>, vector<1x256xf32>
    %95 = vector.broadcast %94 : vector<1x256xf32> to vector<8x256xf32>
    %96 = arith.mulf %93, %95 : vector<8x256xf32>
    %c64_74 = arith.constant 64 : index
    %c0_75 = arith.constant 0 : index
    %97 = vector.load %arg13[%c64_74, %c0_75] : memref<72x256xf32, #tpu.memory_space<vmem>>, vector<8x256xf32>
    tpu.vector_store %arg13[%c64_74, %c0_75], %96 {strides = array<i32>} : memref<72x256xf32, #tpu.memory_space<vmem>>, vector<8x256xf32>,
    %c0_76 = arith.constant 0 : index
    %c0_77 = arith.constant 0 : index
    %98 = vector.load %arg5[%c0_76, %c0_77] : memref<8x72xf32, #tpu.memory_space<vmem>>, vector<8x72xf32>
    %c0_78 = arith.constant 0 : index
    %c0_79 = arith.constant 0 : index
    %99 = vector.load %arg13[%c0_78, %c0_79] : memref<72x256xf32, #tpu.memory_space<vmem>>, vector<72x256xf32>
    %cst_80 = arith.constant dense<0.000000e+00> : vector<8x256xf32>
    %100 = tpu.matmul %98, %99, %cst_80 {dimension_numbers = #tpu.dot_dimension_numbers<[1], [0], [0], [1], [0, 0, 1, 1], [], []>} : vector<8x72xf32>, vector<72x256xf32>, vector<8x256xf32> -> vector<8x256xf32>
    %c0_81 = arith.constant 0 : index
    %c0_82 = arith.constant 0 : index
    %101 = vector.load %arg6[%c0_81, %c0_82] : memref<8x1xf32, #tpu.memory_space<vmem>>, vector<8x1xf32>
    %102 = vector.broadcast %101 : vector<8x1xf32> to vector<8x256xf32>
    %103 = arith.addf %100, %102 : vector<8x256xf32>
    %cst_83 = arith.constant 0.000000e+00 : f32
    %104 = vector.broadcast %cst_83 : f32 to vector<8x256xf32>
    %105 = arith.maximumf %103, %104 : vector<8x256xf32>
    %c17_i32_84 = arith.constant 17 : i32
    %106 = tpu.dynamic_rotate %105 by %c17_i32_84 dim 1 : vector<8x256xf32>, i32 -> vector<8x256xf32>
    %c0_85 = arith.constant 0 : index
    %c0_86 = arith.constant 0 : index
    %107 = vector.load %arg2[%c0_85, %c0_86] : memref<9x256xf32, #tpu.memory_space<vmem>>, vector<1x256xf32>
    %108 = vector.broadcast %107 : vector<1x256xf32> to vector<8x256xf32>
    %109 = arith.mulf %106, %108 : vector<8x256xf32>
    %c0_87 = arith.constant 0 : index
    %c0_88 = arith.constant 0 : index
    %110 = vector.load %arg13[%c0_87, %c0_88] : memref<72x256xf32, #tpu.memory_space<vmem>>, vector<8x256xf32>
    tpu.vector_store %arg13[%c0_87, %c0_88], %109 {strides = array<i32>} : memref<72x256xf32, #tpu.memory_space<vmem>>, vector<8x256xf32>,
    %c16_i32_89 = arith.constant 16 : i32
    %111 = tpu.dynamic_rotate %105 by %c16_i32_89 dim 1 : vector<8x256xf32>, i32 -> vector<8x256xf32>
    %c1_90 = arith.constant 1 : index
    %c0_91 = arith.constant 0 : index
    %112 = vector.load %arg2[%c1_90, %c0_91] : memref<9x256xf32, #tpu.memory_space<vmem>>, vector<1x256xf32>
    %113 = vector.broadcast %112 : vector<1x256xf32> to vector<8x256xf32>
    %114 = arith.mulf %111, %113 : vector<8x256xf32>
    %c8_92 = arith.constant 8 : index
    %c0_93 = arith.constant 0 : index
    %115 = vector.load %arg13[%c8_92, %c0_93] : memref<72x256xf32, #tpu.memory_space<vmem>>, vector<8x256xf32>
    tpu.vector_store %arg13[%c8_92, %c0_93], %114 {strides = array<i32>} : memref<72x256xf32, #tpu.memory_space<vmem>>, vector<8x256xf32>,
    %c15_i32_94 = arith.constant 15 : i32
    %116 = tpu.dynamic_rotate %105 by %c15_i32_94 dim 1 : vector<8x256xf32>, i32 -> vector<8x256xf32>
    %c2_95 = arith.constant 2 : index
    %c0_96 = arith.constant 0 : index
    %117 = vector.load %arg2[%c2_95, %c0_96] : memref<9x256xf32, #tpu.memory_space<vmem>>, vector<1x256xf32>
    %118 = vector.broadcast %117 : vector<1x256xf32> to vector<8x256xf32>
    %119 = arith.mulf %116, %118 : vector<8x256xf32>
    %c16_97 = arith.constant 16 : index
    %c0_98 = arith.constant 0 : index
    %120 = vector.load %arg13[%c16_97, %c0_98] : memref<72x256xf32, #tpu.memory_space<vmem>>, vector<8x256xf32>
    tpu.vector_store %arg13[%c16_97, %c0_98], %119 {strides = array<i32>} : memref<72x256xf32, #tpu.memory_space<vmem>>, vector<8x256xf32>,
    %c1_i32_99 = arith.constant 1 : i32
    %121 = tpu.dynamic_rotate %105 by %c1_i32_99 dim 1 : vector<8x256xf32>, i32 -> vector<8x256xf32>
    %c3_100 = arith.constant 3 : index
    %c0_101 = arith.constant 0 : index
    %122 = vector.load %arg2[%c3_100, %c0_101] : memref<9x256xf32, #tpu.memory_space<vmem>>, vector<1x256xf32>
    %123 = vector.broadcast %122 : vector<1x256xf32> to vector<8x256xf32>
    %124 = arith.mulf %121, %123 : vector<8x256xf32>
    %c24_102 = arith.constant 24 : index
    %c0_103 = arith.constant 0 : index
    %125 = vector.load %arg13[%c24_102, %c0_103] : memref<72x256xf32, #tpu.memory_space<vmem>>, vector<8x256xf32>
    tpu.vector_store %arg13[%c24_102, %c0_103], %124 {strides = array<i32>} : memref<72x256xf32, #tpu.memory_space<vmem>>, vector<8x256xf32>,
    %c4_104 = arith.constant 4 : index
    %c0_105 = arith.constant 0 : index
    %126 = vector.load %arg2[%c4_104, %c0_105] : memref<9x256xf32, #tpu.memory_space<vmem>>, vector<1x256xf32>
    %127 = vector.broadcast %126 : vector<1x256xf32> to vector<8x256xf32>
    %128 = arith.mulf %105, %127 : vector<8x256xf32>
    %c32_106 = arith.constant 32 : index
    %c0_107 = arith.constant 0 : index
    %129 = vector.load %arg13[%c32_106, %c0_107] : memref<72x256xf32, #tpu.memory_space<vmem>>, vector<8x256xf32>
    tpu.vector_store %arg13[%c32_106, %c0_107], %128 {strides = array<i32>} : memref<72x256xf32, #tpu.memory_space<vmem>>, vector<8x256xf32>,
    %c255_i32_108 = arith.constant 255 : i32
    %130 = tpu.dynamic_rotate %105 by %c255_i32_108 dim 1 : vector<8x256xf32>, i32 -> vector<8x256xf32>
    %c5_109 = arith.constant 5 : index
    %c0_110 = arith.constant 0 : index
    %131 = vector.load %arg2[%c5_109, %c0_110] : memref<9x256xf32, #tpu.memory_space<vmem>>, vector<1x256xf32>
    %132 = vector.broadcast %131 : vector<1x256xf32> to vector<8x256xf32>
    %133 = arith.mulf %130, %132 : vector<8x256xf32>
    %c40_111 = arith.constant 40 : index
    %c0_112 = arith.constant 0 : index
    %134 = vector.load %arg13[%c40_111, %c0_112] : memref<72x256xf32, #tpu.memory_space<vmem>>, vector<8x256xf32>
    tpu.vector_store %arg13[%c40_111, %c0_112], %133 {strides = array<i32>} : memref<72x256xf32, #tpu.memory_space<vmem>>, vector<8x256xf32>,
    %c241_i32_113 = arith.constant 241 : i32
    %135 = tpu.dynamic_rotate %105 by %c241_i32_113 dim 1 : vector<8x256xf32>, i32 -> vector<8x256xf32>
    %c6_114 = arith.constant 6 : index
    %c0_115 = arith.constant 0 : index
    %136 = vector.load %arg2[%c6_114, %c0_115] : memref<9x256xf32, #tpu.memory_space<vmem>>, vector<1x256xf32>
    %137 = vector.broadcast %136 : vector<1x256xf32> to vector<8x256xf32>
    %138 = arith.mulf %135, %137 : vector<8x256xf32>
    %c48_116 = arith.constant 48 : index
    %c0_117 = arith.constant 0 : index
    %139 = vector.load %arg13[%c48_116, %c0_117] : memref<72x256xf32, #tpu.memory_space<vmem>>, vector<8x256xf32>
    tpu.vector_store %arg13[%c48_116, %c0_117], %138 {strides = array<i32>} : memref<72x256xf32, #tpu.memory_space<vmem>>, vector<8x256xf32>,
    %c240_i32_118 = arith.constant 240 : i32
    %140 = tpu.dynamic_rotate %105 by %c240_i32_118 dim 1 : vector<8x256xf32>, i32 -> vector<8x256xf32>
    %c7_119 = arith.constant 7 : index
    %c0_120 = arith.constant 0 : index
    %141 = vector.load %arg2[%c7_119, %c0_120] : memref<9x256xf32, #tpu.memory_space<vmem>>, vector<1x256xf32>
    %142 = vector.broadcast %141 : vector<1x256xf32> to vector<8x256xf32>
    %143 = arith.mulf %140, %142 : vector<8x256xf32>
    %c56_121 = arith.constant 56 : index
    %c0_122 = arith.constant 0 : index
    %144 = vector.load %arg13[%c56_121, %c0_122] : memref<72x256xf32, #tpu.memory_space<vmem>>, vector<8x256xf32>
    tpu.vector_store %arg13[%c56_121, %c0_122], %143 {strides = array<i32>} : memref<72x256xf32, #tpu.memory_space<vmem>>, vector<8x256xf32>,
    %c239_i32_123 = arith.constant 239 : i32
    %145 = tpu.dynamic_rotate %105 by %c239_i32_123 dim 1 : vector<8x256xf32>, i32 -> vector<8x256xf32>
    %c8_124 = arith.constant 8 : index
    %c0_125 = arith.constant 0 : index
    %146 = vector.load %arg2[%c8_124, %c0_125] : memref<9x256xf32, #tpu.memory_space<vmem>>, vector<1x256xf32>
    %147 = vector.broadcast %146 : vector<1x256xf32> to vector<8x256xf32>
    %148 = arith.mulf %145, %147 : vector<8x256xf32>
    %c64_126 = arith.constant 64 : index
    %c0_127 = arith.constant 0 : index
    %149 = vector.load %arg13[%c64_126, %c0_127] : memref<72x256xf32, #tpu.memory_space<vmem>>, vector<8x256xf32>
    tpu.vector_store %arg13[%c64_126, %c0_127], %148 {strides = array<i32>} : memref<72x256xf32, #tpu.memory_space<vmem>>, vector<8x256xf32>,
    %c0_128 = arith.constant 0 : index
    %c0_129 = arith.constant 0 : index
    %150 = vector.load %arg7[%c0_128, %c0_129] : memref<16x72xf32, #tpu.memory_space<vmem>>, vector<16x72xf32>
    %c0_130 = arith.constant 0 : index
    %c0_131 = arith.constant 0 : index
    %151 = vector.load %arg13[%c0_130, %c0_131] : memref<72x256xf32, #tpu.memory_space<vmem>>, vector<72x256xf32>
    %cst_132 = arith.constant dense<0.000000e+00> : vector<16x256xf32>
    %152 = tpu.matmul %150, %151, %cst_132 {dimension_numbers = #tpu.dot_dimension_numbers<[1], [0], [0], [1], [0, 0, 1, 1], [], []>} : vector<16x72xf32>, vector<72x256xf32>, vector<16x256xf32> -> vector<16x256xf32>
    %c0_133 = arith.constant 0 : index
    %c0_134 = arith.constant 0 : index
    %153 = vector.load %arg8[%c0_133, %c0_134] : memref<16x1xf32, #tpu.memory_space<vmem>>, vector<16x1xf32>
    %154 = vector.broadcast %153 : vector<16x1xf32> to vector<16x256xf32>
    %155 = arith.addf %152, %154 : vector<16x256xf32>
    %c0_135 = arith.constant 0 : index
    %c0_136 = arith.constant 0 : index
    %156 = vector.load %arg9[%c0_135, %c0_136] : memref<5x16xf32, #tpu.memory_space<vmem>>, vector<5x16xf32>
    %cst_137 = arith.constant dense<0.000000e+00> : vector<5x256xf32>
    %157 = tpu.matmul %156, %155, %cst_137 {dimension_numbers = #tpu.dot_dimension_numbers<[1], [0], [0], [1], [0, 0, 1, 1], [], []>} : vector<5x16xf32>, vector<16x256xf32>, vector<5x256xf32> -> vector<5x256xf32>
    %c0_138 = arith.constant 0 : index
    %c0_139 = arith.constant 0 : index
    %158 = vector.load %arg10[%c0_138, %c0_139] : memref<5x1xf32, #tpu.memory_space<vmem>>, vector<5x1xf32>
    %159 = vector.broadcast %158 : vector<5x1xf32> to vector<5x256xf32>
    %160 = arith.addf %157, %159 : vector<5x256xf32>
    %c0_140 = arith.constant 0 : index
    %c0_141 = arith.constant 0 : index
    %161 = vector.load %arg11[%c0_140, %c0_141] : memref<256x256xf32, #tpu.memory_space<vmem>>, vector<256x256xf32>
    %cst_142 = arith.constant dense<0.000000e+00> : vector<5x256xf32>
    %162 = tpu.matmul %160, %161, %cst_142 {dimension_numbers = #tpu.dot_dimension_numbers<[1], [0], [0], [1], [0, 0, 1, 1], [], []>} : vector<5x256xf32>, vector<256x256xf32>, vector<5x256xf32> -> vector<5x256xf32>
    %c0_143 = arith.constant 0 : index
    %c0_144 = arith.constant 0 : index
    %c0_145 = arith.constant 0 : index
    %163 = vector.load %arg12[%c0_143, %c0_144, %c0_145] : memref<1x5x256xf32, #tpu.memory_space<vmem>>, vector<1x5x256xf32>
    %164 = vector.shape_cast %163 : vector<1x5x256xf32> to vector<5x256xf32>
    %165 = vector.shape_cast %162 : vector<5x256xf32> to vector<1x5x256xf32>
    tpu.vector_store %arg12[%c0_143, %c0_144, %c0_145], %165 {strides = array<i32>} : memref<1x5x256xf32, #tpu.memory_space<vmem>>, vector<1x5x256xf32>,
    return
  }
  func.func @transform_0(%arg0: i32) -> (i32, i32, i32) {
    %c0_i32 = arith.constant 0 : i32
    %c0_i32_0 = arith.constant 0 : i32
    %c0_i32_1 = arith.constant 0 : i32
    return %arg0, %c0_i32, %c0_i32_0 : i32, i32, i32
  }
  func.func @transform_1(%arg0: i32) -> (i32, i32) {
    %c0_i32 = arith.constant 0 : i32
    %c0_i32_0 = arith.constant 0 : i32
    %c0_i32_1 = arith.constant 0 : i32
    return %c0_i32, %c0_i32_0 : i32, i32
  }
  func.func @transform_2(%arg0: i32) -> (i32, i32) {
    %c0_i32 = arith.constant 0 : i32
    %c0_i32_0 = arith.constant 0 : i32
    %c0_i32_1 = arith.constant 0 : i32
    return %c0_i32, %c0_i32_0 : i32, i32
  }
  func.func @transform_3(%arg0: i32) -> (i32, i32) {
    %c0_i32 = arith.constant 0 : i32
    %c0_i32_0 = arith.constant 0 : i32
    %c0_i32_1 = arith.constant 0 : i32
    return %c0_i32, %c0_i32_0 : i32, i32
  }
  func.func @transform_4(%arg0: i32) -> (i32, i32) {
    %c0_i32 = arith.constant 0 : i32
    %c0_i32_0 = arith.constant 0 : i32
    %c0_i32_1 = arith.constant 0 : i32
    return %c0_i32, %c0_i32_0 : i32, i32
  }
  func.func @transform_5(%arg0: i32) -> (i32, i32) {
    %c0_i32 = arith.constant 0 : i32
    %c0_i32_0 = arith.constant 0 : i32
    %c0_i32_1 = arith.constant 0 : i32
    return %c0_i32, %c0_i32_0 : i32, i32
  }
  func.func @transform_6(%arg0: i32) -> (i32, i32) {
    %c0_i32 = arith.constant 0 : i32
    %c0_i32_0 = arith.constant 0 : i32
    %c0_i32_1 = arith.constant 0 : i32
    return %c0_i32, %c0_i32_0 : i32, i32
  }
  func.func @transform_7(%arg0: i32) -> (i32, i32) {
    %c0_i32 = arith.constant 0 : i32
    %c0_i32_0 = arith.constant 0 : i32
    %c0_i32_1 = arith.constant 0 : i32
    return %c0_i32, %c0_i32_0 : i32, i32
  }
  func.func @transform_8(%arg0: i32) -> (i32, i32) {
    %c0_i32 = arith.constant 0 : i32
    %c0_i32_0 = arith.constant 0 : i32
    %c0_i32_1 = arith.constant 0 : i32
    return %c0_i32, %c0_i32_0 : i32, i32
  }
  func.func @transform_9(%arg0: i32) -> (i32, i32) {
    %c0_i32 = arith.constant 0 : i32
    %c0_i32_0 = arith.constant 0 : i32
    %c0_i32_1 = arith.constant 0 : i32
    return %c0_i32, %c0_i32_0 : i32, i32
  }
  func.func @transform_10(%arg0: i32) -> (i32, i32) {
    %c0_i32 = arith.constant 0 : i32
    %c0_i32_0 = arith.constant 0 : i32
    %c0_i32_1 = arith.constant 0 : i32
    return %c0_i32, %c0_i32_0 : i32, i32
  }
  func.func @transform_11(%arg0: i32) -> (i32, i32, i32) {
    %c0_i32 = arith.constant 0 : i32
    %c0_i32_0 = arith.constant 0 : i32
    %c0_i32_1 = arith.constant 0 : i32
    return %arg0, %c0_i32, %c0_i32_0 : i32, i32, i32
  }
}

</mosaic_0001>

<llo_original>
// kernel: dmodel_forward.1
$region0: #{dmodel_forward.1}
  #allocation0 [shape = 'u32[]', space=smem, size = 0x4, offset = 0x4, fixed_abs, tag = 'smem constant byte address 0x4 - core index']
  #allocation1 [shape = 'u32[144,128]{1,0:T(1,128)}', space=vmem, size = 0x12000, scoped, tag = 'internal scratch']
  #allocation2 [shape = 'f32[72,256]{1,0:T(8,128)}', space=vmem, size = 0x12000, scoped, tag = 'scratch operand']
  %s0 = inlined_call_operand.vmem [shape: f32[2,4,256], index: 0, kind: input, shape index: {}]
  %s1 = inlined_call_operand.vmem [shape: f32[9,256], index: 1, kind: input, shape index: {}]
  %s2 = inlined_call_operand.vmem [shape: f32[8,72], index: 2, kind: input, shape index: {}]
  %s3 = inlined_call_operand.vmem [shape: f32[8,1], index: 3, kind: input, shape index: {}]
  %s4 = inlined_call_operand.vmem [shape: f32[8,72], index: 4, kind: input, shape index: {}]
  %s5 = inlined_call_operand.vmem [shape: f32[8,1], index: 5, kind: input, shape index: {}]
  %s6 = inlined_call_operand.vmem [shape: f32[16,72], index: 6, kind: input, shape index: {}]
  %s7 = inlined_call_operand.vmem [shape: f32[16,1], index: 7, kind: input, shape index: {}]
  %s8 = inlined_call_operand.vmem [shape: f32[5,16], index: 8, kind: input, shape index: {}]
  %s9 = inlined_call_operand.vmem [shape: f32[5,1], index: 9, kind: input, shape index: {}]
  %s10 = inlined_call_operand.vmem [shape: f32[256,256], index: 10, kind: input, shape index: {}]
  %s11 = inlined_call_operand.vmem [shape: f32[2,5,256], index: 11, kind: output, shape index: {}]
  %s12 = sld [smem:[#allocation0]]
  $region77: #{dmodel_forward.1} parent=0
    _
  %s14 = ssub.s32 1, %s12
  %s15 = scalar_select 0, %s14, %s12
  loop: start=0, step=1, limit=4
  $region2: #{dmodel_forward.1} parent=0 // loop_pre_header
    _
  $region3: #{dmodel_forward.1} parent=0 // loop_header
    %s17 = sphi 0, %s21
    %p18 = scmp.ge.s32.totalorder %s17, 4
    %s27 = sphi 0, %s29
    %s30 = sphi 0, %s27
    %s31 = sphi 0, %s30
    %s47 = sphi 0, %s31
    %s51 = sphi 0, %s51
    %s53 = sphi 0, %s51
    %s54 = sphi 0, %s53
    %s68 = sphi 0, %s54
    %s72 = sphi 0, %s72
    %s74 = sphi 0, %s72
    %s75 = sphi 0, %s74
    %s89 = sphi 0, %s75
    %s93 = sphi 0, %s93
    %s95 = sphi 0, %s93
    %s96 = sphi 0, %s95
    %s110 = sphi 0, %s96
    %s114 = sphi 0, %s114
    %s116 = sphi 0, %s114
    %s117 = sphi 0, %s116
    %s131 = sphi 0, %s117
    %s135 = sphi 0, %s135
    %s137 = sphi 0, %s135
    %s138 = sphi 0, %s137
    %s152 = sphi 0, %s138
    %s156 = sphi 0, %s156
    %s158 = sphi 0, %s156
    %s159 = sphi 0, %s158
    %s173 = sphi 0, %s159
    %s177 = sphi 0, %s177
    %s179 = sphi 0, %s177
    %s180 = sphi 0, %s179
    %s194 = sphi 0, %s180
    %s198 = sphi 0, %s198
    %s200 = sphi 0, %s198
    %s201 = sphi 0, %s200
    %s215 = sphi 0, %s201
    %s219 = sphi 0, %s219
    %s221 = sphi 0, %s219
    %s222 = sphi 0, %s221
    %s236 = sphi 0, %s222
    %s240 = sphi 0, %s240
    %s242 = sphi 0, %s240
    %s243 = sphi 0, %s242
    %s257 = sphi 0, %s243
    %s263 = sphi 0, %s265
    %s266 = sphi 0, %s263
    %s267 = sphi 0, %s266
    %s283 = sphi 0, %s267
  $region4: #{dmodel_forward.1} parent=0 // loop_header_branch
    %20 = sbr.rel (%p18) target = $region8
  $region5: #{dmodel_forward.1} parent=0 // loop_body
    %s22 = ssub.s32 %s17, 1
    %s23 = ssub.s32 %s17, 2
    %s24 = sadd.s32 %s17, 1
    %s25 = ssub.s32 %s17, %s24
    %p26 = scmp.eq.s32.totalorder %s25, 0
    %s28 = sadd.s32 %s27, 1
    %s29 = scalar_select %p26, %s27, %s28
    %p32 = pneg %p26
    %p33 = scmp.eq.s32.totalorder %s17, 1
    %p34 = por %p32, %p33
    %p35 = scmp.ne.s32.totalorder %s27, %s30
    %p36 = scmp.eq.s32.totalorder %s17, 0
    %p37 = por %p35, %p36
    %p38 = scmp.ne.s32.totalorder %s27, %s30
    %p39 = scmp.eq.s32.totalorder %s22, 1
    %p40 = por %p38, %p39
    %p41 = scmp.ne.s32.totalorder %s30, %s31
    %p42 = scmp.eq.s32.totalorder %s22, 0
    %p43 = por %p41, %p42
    %p44 = scmp.ne.s32.totalorder %s30, %s31
    %p45 = scmp.eq.s32.totalorder %s23, 1
    %p46 = por %p44, %p45
    %p48 = scmp.ne.s32.totalorder %s31, %s47
    %p49 = scmp.eq.s32.totalorder %s23, 0
    %p50 = por %p48, %p49
    %s52 = sadd.s32 %s51, 1
    %p55 = scmp.eq.s32.totalorder %s17, 1
    %p56 = scmp.ne.s32.totalorder %s51, %s53
    %p57 = scmp.eq.s32.totalorder %s17, 0
    %p58 = por %p56, %p57
    %p59 = scmp.ne.s32.totalorder %s51, %s53
    %p60 = scmp.eq.s32.totalorder %s22, 1
    %p61 = por %p59, %p60
    %p62 = scmp.ne.s32.totalorder %s53, %s54
    %p63 = scmp.eq.s32.totalorder %s22, 0
    %p64 = por %p62, %p63
    %p65 = scmp.ne.s32.totalorder %s53, %s54
    %p66 = scmp.eq.s32.totalorder %s23, 1
    %p67 = por %p65, %p66
    %p69 = scmp.ne.s32.totalorder %s54, %s68
    %p70 = scmp.eq.s32.totalorder %s23, 0
    %p71 = por %p69, %p70
    %s73 = sadd.s32 %s72, 1
    %p76 = scmp.eq.s32.totalorder %s17, 1
    %p77 = scmp.ne.s32.totalorder %s72, %s74
    %p78 = scmp.eq.s32.totalorder %s17, 0
    %p79 = por %p77, %p78
    %p80 = scmp.ne.s32.totalorder %s72, %s74
    %p81 = scmp.eq.s32.totalorder %s22, 1
    %p82 = por %p80, %p81
    %p83 = scmp.ne.s32.totalorder %s74, %s75
    %p84 = scmp.eq.s32.totalorder %s22, 0
    %p85 = por %p83, %p84
    %p86 = scmp.ne.s32.totalorder %s74, %s75
    %p87 = scmp.eq.s32.totalorder %s23, 1
    %p88 = por %p86, %p87
    %p90 = scmp.ne.s32.totalorder %s75, %s89
    %p91 = scmp.eq.s32.totalorder %s23, 0
    %p92 = por %p90, %p91
    %s94 = sadd.s32 %s93, 1
    %p97 = scmp.eq.s32.totalorder %s17, 1
    %p98 = scmp.ne.s32.totalorder %s93, %s95
    %p99 = scmp.eq.s32.totalorder %s17, 0
    %p100 = por %p98, %p99
    %p101 = scmp.ne.s32.totalorder %s93, %s95
    %p102 = scmp.eq.s32.totalorder %s22, 1
    %p103 = por %p101, %p102
    %p104 = scmp.ne.s32.totalorder %s95, %s96
    %p105 = scmp.eq.s32.totalorder %s22, 0
    %p106 = por %p104, %p105
    %p107 = scmp.ne.s32.totalorder %s95, %s96
    %p108 = scmp.eq.s32.totalorder %s23, 1
    %p109 = por %p107, %p108
    %p111 = scmp.ne.s32.totalorder %s96, %s110
    %p112 = scmp.eq.s32.totalorder %s23, 0
    %p113 = por %p111, %p112
    %s115 = sadd.s32 %s114, 1
    %p118 = scmp.eq.s32.totalorder %s17, 1
    %p119 = scmp.ne.s32.totalorder %s114, %s116
    %p120 = scmp.eq.s32.totalorder %s17, 0
    %p121 = por %p119, %p120
    %p122 = scmp.ne.s32.totalorder %s114, %s116
    %p123 = scmp.eq.s32.totalorder %s22, 1
    %p124 = por %p122, %p123
    %p125 = scmp.ne.s32.totalorder %s116, %s117
    %p126 = scmp.eq.s32.totalorder %s22, 0
    %p127 = por %p125, %p126
    %p128 = scmp.ne.s32.totalorder %s116, %s117
    %p129 = scmp.eq.s32.totalorder %s23, 1
    %p130 = por %p128, %p129
    %p132 = scmp.ne.s32.totalorder %s117, %s131
    %p133 = scmp.eq.s32.totalorder %s23, 0
    %p134 = por %p132, %p133
    %s136 = sadd.s32 %s135, 1
    %p139 = scmp.eq.s32.totalorder %s17, 1
    %p140 = scmp.ne.s32.totalorder %s135, %s137
    %p141 = scmp.eq.s32.totalorder %s17, 0
    %p142 = por %p140, %p141
    %p143 = scmp.ne.s32.totalorder %s135, %s137
    %p144 = scmp.eq.s32.totalorder %s22, 1
    %p145 = por %p143, %p144
    %p146 = scmp.ne.s32.totalorder %s137, %s138
    %p147 = scmp.eq.s32.totalorder %s22, 0
    %p148 = por %p146, %p147
    %p149 = scmp.ne.s32.totalorder %s137, %s138
    %p150 = scmp.eq.s32.totalorder %s23, 1
    %p151 = por %p149, %p150
    %p153 = scmp.ne.s32.totalorder %s138, %s152
    %p154 = scmp.eq.s32.totalorder %s23, 0
    %p155 = por %p153, %p154
    %s157 = sadd.s32 %s156, 1
    %p160 = scmp.eq.s32.totalorder %s17, 1
    %p161 = scmp.ne.s32.totalorder %s156, %s158
    %p162 = scmp.eq.s32.totalorder %s17, 0
    %p163 = por %p161, %p162
    %p164 = scmp.ne.s32.totalorder %s156, %s158
    %p165 = scmp.eq.s32.totalorder %s22, 1
    %p166 = por %p164, %p165
    %p167 = scmp.ne.s32.totalorder %s158, %s159
    %p168 = scmp.eq.s32.totalorder %s22, 0
    %p169 = por %p167, %p168
    %p170 = scmp.ne.s32.totalorder %s158, %s159
    %p171 = scmp.eq.s32.totalorder %s23, 1
    %p172 = por %p170, %p171
    %p174 = scmp.ne.s32.totalorder %s159, %s173
    %p175 = scmp.eq.s32.totalorder %s23, 0
    %p176 = por %p174, %p175
    %s178 = sadd.s32 %s177, 1
    %p181 = scmp.eq.s32.totalorder %s17, 1
    %p182 = scmp.ne.s32.totalorder %s177, %s179
    %p183 = scmp.eq.s32.totalorder %s17, 0
    %p184 = por %p182, %p183
    %p185 = scmp.ne.s32.totalorder %s177, %s179
    %p186 = scmp.eq.s32.totalorder %s22, 1
    %p187 = por %p185, %p186
    %p188 = scmp.ne.s32.totalorder %s179, %s180
    %p189 = scmp.eq.s32.totalorder %s22, 0
    %p190 = por %p188, %p189
    %p191 = scmp.ne.s32.totalorder %s179, %s180
    %p192 = scmp.eq.s32.totalorder %s23, 1
    %p193 = por %p191, %p192
    %p195 = scmp.ne.s32.totalorder %s180, %s194
    %p196 = scmp.eq.s32.totalorder %s23, 0
    %p197 = por %p195, %p196
    %s199 = sadd.s32 %s198, 1
    %p202 = scmp.eq.s32.totalorder %s17, 1
    %p203 = scmp.ne.s32.totalorder %s198, %s200
    %p204 = scmp.eq.s32.totalorder %s17, 0
    %p205 = por %p203, %p204
    %p206 = scmp.ne.s32.totalorder %s198, %s200
    %p207 = scmp.eq.s32.totalorder %s22, 1
    %p208 = por %p206, %p207
    %p209 = scmp.ne.s32.totalorder %s200, %s201
    %p210 = scmp.eq.s32.totalorder %s22, 0
    %p211 = por %p209, %p210
    %p212 = scmp.ne.s32.totalorder %s200, %s201
    %p213 = scmp.eq.s32.totalorder %s23, 1
    %p214 = por %p212, %p213
    %p216 = scmp.ne.s32.totalorder %s201, %s215
    %p217 = scmp.eq.s32.totalorder %s23, 0
    %p218 = por %p216, %p217
    %s220 = sadd.s32 %s219, 1
    %p223 = scmp.eq.s32.totalorder %s17, 1
    %p224 = scmp.ne.s32.totalorder %s219, %s221
    %p225 = scmp.eq.s32.totalorder %s17, 0
    %p226 = por %p224, %p225
    %p227 = scmp.ne.s32.totalorder %s219, %s221
    %p228 = scmp.eq.s32.totalorder %s22, 1
    %p229 = por %p227, %p228
    %p230 = scmp.ne.s32.totalorder %s221, %s222
    %p231 = scmp.eq.s32.totalorder %s22, 0
    %p232 = por %p230, %p231
    %p233 = scmp.ne.s32.totalorder %s221, %s222
    %p234 = scmp.eq.s32.totalorder %s23, 1
    %p235 = por %p233, %p234
    %p237 = scmp.ne.s32.totalorder %s222, %s236
    %p238 = scmp.eq.s32.totalorder %s23, 0
    %p239 = por %p237, %p238
    %s241 = sadd.s32 %s240, 1
    %p244 = scmp.eq.s32.totalorder %s17, 1
    %p245 = scmp.ne.s32.totalorder %s240, %s242
    %p246 = scmp.eq.s32.totalorder %s17, 0
    %p247 = por %p245, %p246
    %p248 = scmp.ne.s32.totalorder %s240, %s242
    %p249 = scmp.eq.s32.totalorder %s22, 1
    %p250 = por %p248, %p249
    %p251 = scmp.ne.s32.totalorder %s242, %s243
    %p252 = scmp.eq.s32.totalorder %s22, 0
    %p253 = por %p251, %p252
    %p254 = scmp.ne.s32.totalorder %s242, %s243
    %p255 = scmp.eq.s32.totalorder %s23, 1
    %p256 = por %p254, %p255
    %p258 = scmp.ne.s32.totalorder %s243, %s257
    %p259 = scmp.eq.s32.totalorder %s23, 0
    %p260 = por %p258, %p259
    %s261 = ssub.s32 %s17, %s24
    %p262 = scmp.eq.s32.totalorder %s261, 0
    %s264 = sadd.s32 %s263, 1
    %s265 = scalar_select %p262, %s263, %s264
    %p268 = pneg %p262
    %p269 = scmp.eq.s32.totalorder %s17, 1
    %p270 = por %p268, %p269
    %p271 = scmp.ne.s32.totalorder %s263, %s266
    %p272 = scmp.eq.s32.totalorder %s17, 0
    %p273 = por %p271, %p272
    %p274 = scmp.ne.s32.totalorder %s263, %s266
    %p275 = scmp.eq.s32.totalorder %s22, 1
    %p276 = por %p274, %p275
    %p277 = scmp.ne.s32.totalorder %s266, %s267
    %p278 = scmp.eq.s32.totalorder %s22, 0
    %p279 = por %p277, %p278
    %p280 = scmp.ne.s32.totalorder %s266, %s267
    %p281 = scmp.eq.s32.totalorder %s23, 1
    %p282 = por %p280, %p281
    %p284 = scmp.ne.s32.totalorder %s267, %s283
    %p285 = scmp.eq.s32.totalorder %s23, 0
    %p286 = por %p284, %p285
    %p287 = scmp.le.s32.totalorder 1, %s17
    %p288 = scmp.lt.s32.totalorder %s17, 3
    %p289 = pnand %p287, %p288
    %p290 = pneg %p289
    // Predicated region
    $region9: #{dmodel_forward.1} parent=5 // pred_check
      _
    $region10: #{dmodel_forward.1} parent=5 // pred_check_branch
      %292 = sbr.rel (%p289) target = $region12
    $region11: #{dmodel_forward.1} parent=5 // pred_region
      %s293 = ssub.s32 %s17, 1
      // Predicated region
      $region13: #{dmodel_forward.1} parent=11 // pred_check
        %p294 = pneg %p64
      $region14: #{dmodel_forward.1} parent=11 // pred_check_branch
        %296 = sbr.rel (%p294) target = $region16
      $region15: #{dmodel_forward.1} parent=11 // pred_region
        _
      $region16: #{dmodel_forward.1} parent=11 // pred_fallthru
        _
      // Predicated region
      $region17: #{dmodel_forward.1} parent=11 // pred_check
        %p297 = pneg %p85
      $region18: #{dmodel_forward.1} parent=11 // pred_check_branch
        %299 = sbr.rel (%p297) target = $region20
      $region19: #{dmodel_forward.1} parent=11 // pred_region
        _
      $region20: #{dmodel_forward.1} parent=11 // pred_fallthru
        _
      // Predicated region
      $region21: #{dmodel_forward.1} parent=11 // pred_check
        %p300 = pneg %p106
      $region22: #{dmodel_forward.1} parent=11 // pred_check_branch
        %302 = sbr.rel (%p300) target = $region24
      $region23: #{dmodel_forward.1} parent=11 // pred_region
        _
      $region24: #{dmodel_forward.1} parent=11 // pred_fallthru
        _
      // Predicated region
      $region25: #{dmodel_forward.1} parent=11 // pred_check
        %p303 = pneg %p127
      $region26: #{dmodel_forward.1} parent=11 // pred_check_branch
        %305 = sbr.rel (%p303) target = $region28
      $region27: #{dmodel_forward.1} parent=11 // pred_region
        _
      $region28: #{dmodel_forward.1} parent=11 // pred_fallthru
        _
      // Predicated region
      $region29: #{dmodel_forward.1} parent=11 // pred_check
        %p306 = pneg %p148
      $region30: #{dmodel_forward.1} parent=11 // pred_check_branch
        %308 = sbr.rel (%p306) target = $region32
      $region31: #{dmodel_forward.1} parent=11 // pred_region
        _
      $region32: #{dmodel_forward.1} parent=11 // pred_fallthru
        _
      // Predicated region
      $region33: #{dmodel_forward.1} parent=11 // pred_check
        %p309 = pneg %p169
      $region34: #{dmodel_forward.1} parent=11 // pred_check_branch
        %311 = sbr.rel (%p309) target = $region36
      $region35: #{dmodel_forward.1} parent=11 // pred_region
        _
      $region36: #{dmodel_forward.1} parent=11 // pred_fallthru
        _
      // Predicated region
      $region37: #{dmodel_forward.1} parent=11 // pred_check
        %p312 = pneg %p190
      $region38: #{dmodel_forward.1} parent=11 // pred_check_branch
        %314 = sbr.rel (%p312) target = $region40
      $region39: #{dmodel_forward.1} parent=11 // pred_region
        _
      $region40: #{dmodel_forward.1} parent=11 // pred_fallthru
        _
      // Predicated region
      $region41: #{dmodel_forward.1} parent=11 // pred_check
        %p315 = pneg %p211
      $region42: #{dmodel_forward.1} parent=11 // pred_check_branch
        %317 = sbr.rel (%p315) target = $region44
      $region43: #{dmodel_forward.1} parent=11 // pred_region
        _
      $region44: #{dmodel_forward.1} parent=11 // pred_fallthru
        _
      // Predicated region
      $region45: #{dmodel_forward.1} parent=11 // pred_check
        %p318 = pneg %p232
      $region46: #{dmodel_forward.1} parent=11 // pred_check_branch
        %320 = sbr.rel (%p318) target = $region48
      $region47: #{dmodel_forward.1} parent=11 // pred_region
        _
      $region48: #{dmodel_forward.1} parent=11 // pred_fallthru
        _
      // Predicated region
      $region49: #{dmodel_forward.1} parent=11 // pred_check
        %p321 = pneg %p253
      $region50: #{dmodel_forward.1} parent=11 // pred_check_branch
        %323 = sbr.rel (%p321) target = $region52
      $region51: #{dmodel_forward.1} parent=11 // pred_region
        _
      $region52: #{dmodel_forward.1} parent=11 // pred_fallthru
        _
    $region12: #{dmodel_forward.1} parent=5 // pred_fallthru
      _
    %p324 = scmp.lt.s32.totalorder %s17, 2
    // Predicated region
    $region53: #{dmodel_forward.1} parent=5 // pred_check
      %p325 = pneg %p324
    $region54: #{dmodel_forward.1} parent=5 // pred_check_branch
      %327 = sbr.rel (%p325) target = $region56
    $region55: #{dmodel_forward.1} parent=5 // pred_region
      // Predicated region
      $region57: #{dmodel_forward.1} parent=55 // pred_check
        %p328 = pneg %p37
      $region58: #{dmodel_forward.1} parent=55 // pred_check_branch
        %330 = sbr.rel (%p328) target = $region60
      $region59: #{dmodel_forward.1} parent=55 // pred_region
        %p331 = scmp.lt.s32.totalorder %s17, 1
        %s332 = scalar_select %p331, %s17, 1
        %s333 = smul.addr %s332, 2
        %s334 = smul.addr %s333, 4
        %s335 = scalar_lea.vmem %s0, %s334
      $region60: #{dmodel_forward.1} parent=55 // pred_fallthru
        _
    $region56: #{dmodel_forward.1} parent=5 // pred_fallthru
      _
    %p336 = scmp.le.s32.totalorder 1, %s17
    %p337 = scmp.lt.s32.totalorder %s17, 3
    %p338 = pnand %p336, %p337
    %p339 = pneg %p338
    // Predicated region
    $region61: #{dmodel_forward.1} parent=5 // pred_check
      _
    $region62: #{dmodel_forward.1} parent=5 // pred_check_branch
      %341 = sbr.rel (%p338) target = $region64
    $region63: #{dmodel_forward.1} parent=5 // pred_region
      %s342 = ssub.s32 %s17, 1
      %p343 = scmp.lt.s32.totalorder %s22, 1
      %s344 = scalar_select %p343, %s22, 1
      %s345 = smul.addr %s344, 2
      %s346 = smul.addr %s345, 4
      %s347 = scalar_lea.vmem %s0, %s346
      %p348 = pneg %p43
      %p349 = pneg %p40
      %p350 = pneg %p64
      %p351 = pneg %p61
      %p352 = pneg %p85
      %p353 = pneg %p82
      %p354 = pneg %p106
      %p355 = pneg %p103
      %p356 = pneg %p127
      %p357 = pneg %p124
      %p358 = pneg %p148
      %p359 = pneg %p145
      %p360 = pneg %p169
      %p361 = pneg %p166
      %p362 = pneg %p190
      %p363 = pneg %p187
      %p364 = pneg %p211
      %p365 = pneg %p208
      %p366 = pneg %p232
      %p367 = pneg %p229
      %p368 = pneg %p253
      %p369 = pneg %p250
      %p370 = pneg %p279
      %p371 = pneg %p276
      %p372 = scmp.lt.s32.totalorder %s22, 1
      %s373 = scalar_select %p372, %s22, 1
      %s374 = smul.addr %s373, 2
      %s375 = smul.addr %s374, 8
      %s376 = scalar_lea.vmem %s11, %s375
      %p377 = scmp.lt.s32.totalorder %s22, 1
      %s378 = scalar_select %p377, %s22, 1
      %s379 = smul.addr %s378, 2
      %s380 = smul.addr %s379, 4
      %s381 = scalar_lea.vmem %s0, %s380
      %p382 = scmp.lt.s32.totalorder %s22, 1
      %s383 = scalar_select %p382, %s22, 1
      %s384 = smul.addr %s383, 2
      %s385 = smul.addr %s384, 8
      %s386 = scalar_lea.vmem %s11, %s385
      %387 = vst [vmem:[#allocation2] sm:$0xff] 0.0
      %388 = vst [vmem:[#allocation2 + $0x8] sm:$0xff] 0.0
      %389 = vst [vmem:[#allocation2 + $0x10] sm:$0xff] 0.0
      %390 = vst [vmem:[#allocation2 + $0x18] sm:$0xff] 0.0
      %391 = vst [vmem:[#allocation2 + $0x20] sm:$0xff] 0.0
      %392 = vst [vmem:[#allocation2 + $0x28] sm:$0xff] 0.0
      %393 = vst [vmem:[#allocation2 + $0x30] sm:$0xff] 0.0
      %394 = vst [vmem:[#allocation2 + $0x38] sm:$0xff] 0.0
      %395 = vst [vmem:[#allocation2 + $0x40] sm:$0xff] 0.0
      %396 = vst [vmem:[#allocation2 + $0x48] sm:$0xff] 0.0
      %397 = vst [vmem:[#allocation2 + $0x50] sm:$0xff] 0.0
      %398 = vst [vmem:[#allocation2 + $0x58] sm:$0xff] 0.0
      %399 = vst [vmem:[#allocation2 + $0x60] sm:$0xff] 0.0
      %400 = vst [vmem:[#allocation2 + $0x68] sm:$0xff] 0.0
      %401 = vst [vmem:[#allocation2 + $0x70] sm:$0xff] 0.0
      %402 = vst [vmem:[#allocation2 + $0x78] sm:$0xff] 0.0
      %403 = vst [vmem:[#allocation2 + $0x80] sm:$0xff] 0.0
      %404 = vst [vmem:[#allocation2 + $0x88] sm:$0xff] 0.0
      %v405 = vld [vmem:[%s381] sm:$0xff]
      %v407 = vcombine.high %v405, %v405
      %409 = vrot.lane.b32.xlu0 %v405, 17
      %v410 = vpop.permute.xlu0 %409
      %411 = vrot.lane.b32.xlu0 %v407, 17
      %v412 = vpop.permute.xlu0 %411
      %v413 = vlaneseq
      %v414 = vand.u32 %v413, 127
      %vm415 = vcmp.lt.s32.totalorder %v414, 17
      %v416 = vsel %vm415, %v410, %v412
      %v417 = vsel %vm415, %v412, %v410
      %v418 = vld [vmem:[%s1] ss:$8 sm:$0x3]
      %v420 = vlaneseq
      %v421 = vshrl.u32 %v420, 7
      %v422 = vsub.s32 0, %v421
      %v423 = vrot.slane %v418, %v422
      %v424 = vlaneseq
      %v425 = vshrl.u32 %v424, 7
      %v426 = vsub.s32 1, %v425
      %v427 = vrot.slane %v418, %v426
      %v430 = vmul.f32 %v417, %v423
      %v431 = vmul.f32 %v416, %v427
      %432 = vst [vmem:[#allocation2] sm:$0xf] %v430
      %433 = vst [vmem:[#allocation2 + $0x8] sm:$0xf] %v431
      %434 = vrot.lane.b32.xlu0 %v405, 16
      %v435 = vpop.permute.xlu0 %434
      %436 = vrot.lane.b32.xlu0 %v407, 16
      %v437 = vpop.permute.xlu0 %436
      %vm438 = vcmp.lt.s32.totalorder %v414, 16
      %v439 = vsel %vm438, %v435, %v437
      %v440 = vsel %vm438, %v437, %v435
      %s441 = scalar_lea.vmem %s1, 1
      %v442 = vld [vmem:[%s441] ss:$8 sm:$0x3]
      %v444 = vlaneseq
      %v445 = vshrl.u32 %v444, 7
      %v446 = vsub.s32 0, %v445
      %v447 = vrot.slane %v442, %v446
      %v448 = vlaneseq
      %v449 = vshrl.u32 %v448, 7
      %v450 = vsub.s32 1, %v449
      %v451 = vrot.slane %v442, %v450
      %v454 = vmul.f32 %v440, %v447
      %v455 = vmul.f32 %v439, %v451
      %456 = vst [vmem:[#allocation2 + $0x10] sm:$0xf] %v454
      %457 = vst [vmem:[#allocation2 + $0x18] sm:$0xf] %v455
      %458 = vrot.lane.b32.xlu0 %v405, 15
      %v459 = vpop.permute.xlu0 %458
      %460 = vrot.lane.b32.xlu0 %v407, 15
      %v461 = vpop.permute.xlu0 %460
      %vm462 = vcmp.lt.s32.totalorder %v414, 15
      %v463 = vsel %vm462, %v459, %v461
      %v464 = vsel %vm462, %v461, %v459
      %s465 = scalar_lea.vmem %s1, 2
      %v466 = vld [vmem:[%s465] ss:$8 sm:$0x3]
      %v468 = vlaneseq
      %v469 = vshrl.u32 %v468, 7
      %v470 = vsub.s32 0, %v469
      %v471 = vrot.slane %v466, %v470
      %v472 = vlaneseq
      %v473 = vshrl.u32 %v472, 7
      %v474 = vsub.s32 1, %v473
      %v475 = vrot.slane %v466, %v474
      %v478 = vmul.f32 %v464, %v471
      %v479 = vmul.f32 %v463, %v475
      %480 = vst [vmem:[#allocation2 + $0x20] sm:$0xf] %v478
      %481 = vst [vmem:[#allocation2 + $0x28] sm:$0xf] %v479
      %482 = vrot.lane.b32.xlu0 %v405, 1
      %v483 = vpop.permute.xlu0 %482
      %484 = vrot.lane.b32.xlu0 %v407, 1
      %v485 = vpop.permute.xlu0 %484
      %vm486 = vcmp.lt.s32.totalorder %v414, 1
      %v487 = vsel %vm486, %v483, %v485
      %v488 = vsel %vm486, %v485, %v483
      %s489 = scalar_lea.vmem %s1, 3
      %v490 = vld [vmem:[%s489] ss:$8 sm:$0x3]
      %v492 = vlaneseq
      %v493 = vshrl.u32 %v492, 7
      %v494 = vsub.s32 0, %v493
      %v495 = vrot.slane %v490, %v494
      %v496 = vlaneseq
      %v497 = vshrl.u32 %v496, 7
      %v498 = vsub.s32 1, %v497
      %v499 = vrot.slane %v490, %v498
      %v502 = vmul.f32 %v488, %v495
      %v503 = vmul.f32 %v487, %v499
      %504 = vst [vmem:[#allocation2 + $0x30] sm:$0xf] %v502
      %505 = vst [vmem:[#allocation2 + $0x38] sm:$0xf] %v503
      %s506 = scalar_lea.vmem %s1, 4
      %v507 = vld [vmem:[%s506] ss:$8 sm:$0x3]
      %v509 = vlaneseq
      %v510 = vshrl.u32 %v509, 7
      %v511 = vsub.s32 0, %v510
      %v512 = vrot.slane %v507, %v511
      %v513 = vlaneseq
      %v514 = vshrl.u32 %v513, 7
      %v515 = vsub.s32 1, %v514
      %v516 = vrot.slane %v507, %v515
      %v517 = vcombine.low %v512, %v516
      %v519 = vmul.f32 %v405, %v517
      %v521 = vcombine.high %v519, %v519
      %523 = vst [vmem:[#allocation2 + $0x40] sm:$0xf] %v519
      %524 = vst [vmem:[#allocation2 + $0x48] sm:$0xf] %v521
      %525 = vrot.lane.b32.xlu0 %v405, 127
      %v526 = vpop.permute.xlu0 %525
      %527 = vrot.lane.b32.xlu0 %v407, 127
      %v528 = vpop.permute.xlu0 %527
      %vm529 = vcmp.lt.s32.totalorder %v414, 127
      %v530 = vsel %vm529, %v526, %v528
      %v531 = vsel %vm529, %v528, %v526
      %s532 = scalar_lea.vmem %s1, 5
      %v533 = vld [vmem:[%s532] ss:$8 sm:$0x3]
      %v535 = vlaneseq
      %v536 = vshrl.u32 %v535, 7
      %v537 = vsub.s32 0, %v536
      %v538 = vrot.slane %v533, %v537
      %v539 = vlaneseq
      %v540 = vshrl.u32 %v539, 7
      %v541 = vsub.s32 1, %v540
      %v542 = vrot.slane %v533, %v541
      %v545 = vmul.f32 %v530, %v538
      %v546 = vmul.f32 %v531, %v542
      %547 = vst [vmem:[#allocation2 + $0x50] sm:$0xf] %v545
      %548 = vst [vmem:[#allocation2 + $0x58] sm:$0xf] %v546
      %549 = vrot.lane.b32.xlu0 %v405, 113
      %v550 = vpop.permute.xlu0 %549
      %551 = vrot.lane.b32.xlu0 %v407, 113
      %v552 = vpop.permute.xlu0 %551
      %vm553 = vcmp.lt.s32.totalorder %v414, 113
      %v554 = vsel %vm553, %v550, %v552
      %v555 = vsel %vm553, %v552, %v550
      %s556 = scalar_lea.vmem %s1, 6
      %v557 = vld [vmem:[%s556] ss:$8 sm:$0x3]
      %v559 = vlaneseq
      %v560 = vshrl.u32 %v559, 7
      %v561 = vsub.s32 0, %v560
      %v562 = vrot.slane %v557, %v561
      %v563 = vlaneseq
      %v564 = vshrl.u32 %v563, 7
      %v565 = vsub.s32 1, %v564
      %v566 = vrot.slane %v557, %v565
      %v569 = vmul.f32 %v554, %v562
      %v570 = vmul.f32 %v555, %v566
      %571 = vst [vmem:[#allocation2 + $0x60] sm:$0xf] %v569
      %572 = vst [vmem:[#allocation2 + $0x68] sm:$0xf] %v570
      %573 = vrot.lane.b32.xlu0 %v405, 112
      %v574 = vpop.permute.xlu0 %573
      %575 = vrot.lane.b32.xlu0 %v407, 112
      %v576 = vpop.permute.xlu0 %575
      %vm577 = vcmp.lt.s32.totalorder %v414, 112
      %v578 = vsel %vm577, %v574, %v576
      %v579 = vsel %vm577, %v576, %v574
      %s580 = scalar_lea.vmem %s1, 7
      %v581 = vld [vmem:[%s580] ss:$8 sm:$0x3]
      %v583 = vlaneseq
      %v584 = vshrl.u32 %v583, 7
      %v585 = vsub.s32 0, %v584
      %v586 = vrot.slane %v581, %v585
      %v587 = vlaneseq
      %v588 = vshrl.u32 %v587, 7
      %v589 = vsub.s32 1, %v588
      %v590 = vrot.slane %v581, %v589
      %v593 = vmul.f32 %v578, %v586
      %v594 = vmul.f32 %v579, %v590
      %595 = vst [vmem:[#allocation2 + $0x70] sm:$0xf] %v593
      %596 = vst [vmem:[#allocation2 + $0x78] sm:$0xf] %v594
      %597 = vrot.lane.b32.xlu0 %v405, 111
      %v598 = vpop.permute.xlu0 %597
      %599 = vrot.lane.b32.xlu0 %v407, 111
      %v600 = vpop.permute.xlu0 %599
      %vm601 = vcmp.lt.s32.totalorder %v414, 111
      %v602 = vsel %vm601, %v598, %v600
      %v603 = vsel %vm601, %v600, %v598
      %s604 = scalar_lea.vmem %s1, 16
      %v605 = vld [vmem:[%s604] ss:$8 sm:$0x3]
      %v607 = vlaneseq
      %v608 = vshrl.u32 %v607, 7
      %v609 = vsub.s32 0, %v608
      %v610 = vrot.slane %v605, %v609
      %v611 = vlaneseq
      %v612 = vshrl.u32 %v611, 7
      %v613 = vsub.s32 1, %v612
      %v614 = vrot.slane %v605, %v613
      %v617 = vmul.f32 %v602, %v610
      %v618 = vmul.f32 %v603, %v614
      %619 = vst [vmem:[#allocation2 + $0x80] sm:$0xf] %v617
      %620 = vst [vmem:[#allocation2 + $0x88] sm:$0xf] %v618
      %v621 = vld [vmem:[%s2] sm:$0xff]
      %v622 = vld [vmem:[#allocation2] sm:$0xff]
      %v623 = vld [vmem:[#allocation2 + $0x8] sm:$0xff]
      %v624 = vld [vmem:[#allocation2 + $0x10] sm:$0xff]
      %v625 = vld [vmem:[#allocation2 + $0x18] sm:$0xff]
      %v626 = vld [vmem:[#allocation2 + $0x20] sm:$0xff]
      %v627 = vld [vmem:[#allocation2 + $0x28] sm:$0xff]
      %v628 = vld [vmem:[#allocation2 + $0x30] sm:$0xff]
      %v629 = vld [vmem:[#allocation2 + $0x38] sm:$0xff]
      %v630 = vld [vmem:[#allocation2 + $0x40] sm:$0xff]
      %v631 = vld [vmem:[#allocation2 + $0x48] sm:$0xff]
      %v632 = vld [vmem:[#allocation2 + $0x50] sm:$0xff]
      %v633 = vld [vmem:[#allocation2 + $0x58] sm:$0xff]
      %v634 = vld [vmem:[#allocation2 + $0x60] sm:$0xff]
      %v635 = vld [vmem:[#allocation2 + $0x68] sm:$0xff]
      %v636 = vld [vmem:[#allocation2 + $0x70] sm:$0xff]
      %v637 = vld [vmem:[#allocation2 + $0x78] sm:$0xff]
      %v638 = vld [vmem:[#allocation2 + $0x80] sm:$0xff]
      %v639 = vld [vmem:[#allocation2 + $0x88] sm:$0xff]
      %v640 = vld [vmem:[%s3] sm:$0xff]
      %642 = vset.pattern.permute.xlu0 0
      %643 = vperm.xlu0 %642, %v640
      %v644 = vpop.permute.xlu0 %643
      %vm646 = vcmask 588800
      %v648 = vsel %vm646, %v621, 0
      %650 = vmatprep.subr.mxu0 0.0
      %651 = vmatpush1.msra.mxu0 0.0
      %652 = vmatprep.subr.mxu0 0.0
      %653 = vmatpush1.msra.mxu0 0.0
      %654 = vmatprep.subr.mxu0 0.0
      %655 = vmatpush1.msra.mxu0 0.0
      %656 = vmatprep.subr.mxu0 0.0
      %657 = vmatpush1.msra.mxu0 0.0
      %658 = vmatprep.subr.mxu0 0.0
      %659 = vmatpush1.msra.mxu0 0.0
      %660 = vmatprep.subr.mxu0 0.0
      %661 = vmatpush1.msra.mxu0 0.0
      %662 = vmatprep.subr.mxu0 0.0
      %663 = vmatpush1.msra.mxu0 0.0
      %664 = vmatprep.subr.mxu0 %v639
      %665 = vmatpush1.msra.mxu0 %v638
      %666 = vmatprep.subr.mxu0 %v637
      %667 = vmatpush1.msra.mxu0 %v636
      %668 = vmatprep.subr.mxu0 %v635
      %669 = vmatpush1.msra.mxu0 %v634
      %670 = vmatprep.subr.mxu0 %v633
      %671 = vmatpush1.msra.mxu0 %v632
      %672 = vmatprep.subr.mxu0 %v631
      %673 = vmatpush1.msra.mxu0 %v630
      %674 = vmatprep.subr.mxu0 %v629
      %675 = vmatpush1.msra.mxu0 %v628
      %676 = vmatprep.subr.mxu0 %v627
      %677 = vmatpush1.msra.mxu0 %v626
      %678 = vmatprep.subr.mxu0 %v625
      %679 = vmatpush1.msra.mxu0 %v624
      %680 = vmatprep.subr.mxu0 %v623
      %681 = vmatpush1.msra.mxu0 %v622
      %682 = vmatprep.subr.mxu0 0.0
      %683 = vmatpush2.msra.mxu0 0.0
      %684 = vmatprep.subr.mxu0 0.0
      %685 = vmatpush2.msra.mxu0 0.0
      %686 = vmatprep.subr.mxu0 0.0
      %687 = vmatpush2.msra.mxu0 0.0
      %688 = vmatprep.subr.mxu0 0.0
      %689 = vmatpush2.msra.mxu0 0.0
      %690 = vmatprep.subr.mxu0 0.0
      %691 = vmatpush2.msra.mxu0 0.0
      %692 = vmatprep.subr.mxu0 0.0
      %693 = vmatpush2.msra.mxu0 0.0
      %694 = vmatprep.subr.mxu0 0.0
      %695 = vmatpush2.msra.mxu0 0.0
      %696 = vmatprep.subr.mxu0 0.0
      %697 = vmatpush2.msra.mxu0 0.0
      %698 = vmatprep.subr.mxu0 0.0
      %699 = vmatpush2.msra.mxu0 0.0
      %700 = vmatprep.subr.mxu0 0.0
      %701 = vmatpush2.msra.mxu0 0.0
      %702 = vmatprep.subr.mxu0 0.0
      %703 = vmatpush2.msra.mxu0 0.0
      %704 = vmatprep.subr.mxu0 0.0
      %705 = vmatpush2.msra.mxu0 0.0
      %706 = vmatprep.subr.mxu0 0.0
      %707 = vmatpush2.msra.mxu0 0.0
      %708 = vmatprep.subr.mxu0 0.0
      %709 = vmatpush2.msra.mxu0 0.0
      %710 = vmatprep.subr.mxu0 0.0
      %711 = vmatpush2.msra.mxu0 0.0
      %712 = vmatprep.subr.mxu0 0.0
      %713 = vmatpush2.msra.mxu0 0.0
      %714 = vmatprep.mubr.f32.mxu0 0.0
      %715 = vmatmul.mubr.f32.gmra.mxu0 %v648
      %v716 = vpop.f32.mrf.mxu0
      %v717 = vadd.f32 %v644, %v716
      %v718 = vpop.f32.mrf.mxu0
      %v719 = vadd.f32 %v644, %v718
      %720 = vdwg.mxu0
      %721 = vrot.lane.b32.xlu0 %v717, 17
      %v722 = vpop.permute.xlu0 %721
      %723 = vrot.lane.b32.xlu0 %v719, 17
      %v724 = vpop.permute.xlu0 %723
      %v725 = vsel %vm415, %v722, %v724
      %v726 = vsel %vm415, %v724, %v722
      %v727 = vld [vmem:[%s1] ss:$8 sm:$0x3]
      %v729 = vlaneseq
      %v730 = vshrl.u32 %v729, 7
      %v731 = vsub.s32 0, %v730
      %v732 = vrot.slane %v727, %v731
      %v733 = vlaneseq
      %v734 = vshrl.u32 %v733, 7
      %v735 = vsub.s32 1, %v734
      %v736 = vrot.slane %v727, %v735
      %v739 = vmul.f32 %v726, %v732
      %v740 = vmul.f32 %v725, %v736
      %741 = vst [vmem:[#allocation2] sm:$0xff] %v739
      %742 = vst [vmem:[#allocation2 + $0x8] sm:$0xff] %v740
      %743 = vrot.lane.b32.xlu0 %v717, 16
      %v744 = vpop.permute.xlu0 %743
      %745 = vrot.lane.b32.xlu0 %v719, 16
      %v746 = vpop.permute.xlu0 %745
      %v747 = vsel %vm438, %v744, %v746
      %v748 = vsel %vm438, %v746, %v744
      %v749 = vld [vmem:[%s441] ss:$8 sm:$0x3]
      %v751 = vlaneseq
      %v752 = vshrl.u32 %v751, 7
      %v753 = vsub.s32 0, %v752
      %v754 = vrot.slane %v749, %v753
      %v755 = vlaneseq
      %v756 = vshrl.u32 %v755, 7
      %v757 = vsub.s32 1, %v756
      %v758 = vrot.slane %v749, %v757
      %v761 = vmul.f32 %v748, %v754
      %v762 = vmul.f32 %v747, %v758
      %763 = vst [vmem:[#allocation2 + $0x10] sm:$0xff] %v761
      %764 = vst [vmem:[#allocation2 + $0x18] sm:$0xff] %v762
      %765 = vrot.lane.b32.xlu0 %v717, 15
      %v766 = vpop.permute.xlu0 %765
      %767 = vrot.lane.b32.xlu0 %v719, 15
      %v768 = vpop.permute.xlu0 %767
      %v769 = vsel %vm462, %v766, %v768
      %v770 = vsel %vm462, %v768, %v766
      %v771 = vld [vmem:[%s465] ss:$8 sm:$0x3]
      %v773 = vlaneseq
      %v774 = vshrl.u32 %v773, 7
      %v775 = vsub.s32 0, %v774
      %v776 = vrot.slane %v771, %v775
      %v777 = vlaneseq
      %v778 = vshrl.u32 %v777, 7
      %v779 = vsub.s32 1, %v778
      %v780 = vrot.slane %v771, %v779
      %v783 = vmul.f32 %v770, %v776
      %v784 = vmul.f32 %v769, %v780
      %785 = vst [vmem:[#allocation2 + $0x20] sm:$0xff] %v783
      %786 = vst [vmem:[#allocation2 + $0x28] sm:$0xff] %v784
      %787 = vrot.lane.b32.xlu0 %v717, 1
      %v788 = vpop.permute.xlu0 %787
      %789 = vrot.lane.b32.xlu0 %v719, 1
      %v790 = vpop.permute.xlu0 %789
      %v791 = vsel %vm486, %v788, %v790
      %v792 = vsel %vm486, %v790, %v788
      %v793 = vld [vmem:[%s489] ss:$8 sm:$0x3]
      %v795 = vlaneseq
      %v796 = vshrl.u32 %v795, 7
      %v797 = vsub.s32 0, %v796
      %v798 = vrot.slane %v793, %v797
      %v799 = vlaneseq
      %v800 = vshrl.u32 %v799, 7
      %v801 = vsub.s32 1, %v800
      %v802 = vrot.slane %v793, %v801
      %v805 = vmul.f32 %v792, %v798
      %v806 = vmul.f32 %v791, %v802
      %807 = vst [vmem:[#allocation2 + $0x30] sm:$0xff] %v805
      %808 = vst [vmem:[#allocation2 + $0x38] sm:$0xff] %v806
      %v809 = vld [vmem:[%s506] ss:$8 sm:$0x3]
      %v811 = vlaneseq
      %v812 = vshrl.u32 %v811, 7
      %v813 = vsub.s32 0, %v812
      %v814 = vrot.slane %v809, %v813
      %v815 = vlaneseq
      %v816 = vshrl.u32 %v815, 7
      %v817 = vsub.s32 1, %v816
      %v818 = vrot.slane %v809, %v817
      %v821 = vmul.f32 %v717, %v814
      %v822 = vmul.f32 %v719, %v818
      %823 = vst [vmem:[#allocation2 + $0x40] sm:$0xff] %v821
      %824 = vst [vmem:[#allocation2 + $0x48] sm:$0xff] %v822
      %825 = vrot.lane.b32.xlu0 %v717, 127
      %v826 = vpop.permute.xlu0 %825
      %827 = vrot.lane.b32.xlu0 %v719, 127
      %v828 = vpop.permute.xlu0 %827
      %v829 = vsel %vm529, %v826, %v828
      %v830 = vsel %vm529, %v828, %v826
      %v831 = vld [vmem:[%s532] ss:$8 sm:$0x3]
      %v833 = vlaneseq
      %v834 = vshrl.u32 %v833, 7
      %v835 = vsub.s32 0, %v834
      %v836 = vrot.slane %v831, %v835
      %v837 = vlaneseq
      %v838 = vshrl.u32 %v837, 7
      %v839 = vsub.s32 1, %v838
      %v840 = vrot.slane %v831, %v839
      %v843 = vmul.f32 %v829, %v836
      %v844 = vmul.f32 %v830, %v840
      %845 = vst [vmem:[#allocation2 + $0x50] sm:$0xff] %v843
      %846 = vst [vmem:[#allocation2 + $0x58] sm:$0xff] %v844
      %847 = vrot.lane.b32.xlu0 %v717, 113
      %v848 = vpop.permute.xlu0 %847
      %849 = vrot.lane.b32.xlu0 %v719, 113
      %v850 = vpop.permute.xlu0 %849
      %v851 = vsel %vm553, %v848, %v850
      %v852 = vsel %vm553, %v850, %v848
      %v853 = vld [vmem:[%s556] ss:$8 sm:$0x3]
      %v855 = vlaneseq
      %v856 = vshrl.u32 %v855, 7
      %v857 = vsub.s32 0, %v856
      %v858 = vrot.slane %v853, %v857
      %v859 = vlaneseq
      %v860 = vshrl.u32 %v859, 7
      %v861 = vsub.s32 1, %v860
      %v862 = vrot.slane %v853, %v861
      %v865 = vmul.f32 %v851, %v858
      %v866 = vmul.f32 %v852, %v862
      %867 = vst [vmem:[#allocation2 + $0x60] sm:$0xff] %v865
      %868 = vst [vmem:[#allocation2 + $0x68] sm:$0xff] %v866
      %869 = vrot.lane.b32.xlu0 %v717, 112
      %v870 = vpop.permute.xlu0 %869
      %871 = vrot.lane.b32.xlu0 %v719, 112
      %v872 = vpop.permute.xlu0 %871
      %v873 = vsel %vm577, %v870, %v872
      %v874 = vsel %vm577, %v872, %v870
      %v875 = vld [vmem:[%s580] ss:$8 sm:$0x3]
      %v877 = vlaneseq
      %v878 = vshrl.u32 %v877, 7
      %v879 = vsub.s32 0, %v878
      %v880 = vrot.slane %v875, %v879
      %v881 = vlaneseq
      %v882 = vshrl.u32 %v881, 7
      %v883 = vsub.s32 1, %v882
      %v884 = vrot.slane %v875, %v883
      %v887 = vmul.f32 %v873, %v880
      %v888 = vmul.f32 %v874, %v884
      %889 = vst [vmem:[#allocation2 + $0x70] sm:$0xff] %v887
      %890 = vst [vmem:[#allocation2 + $0x78] sm:$0xff] %v888
      %891 = vrot.lane.b32.xlu0 %v717, 111
      %v892 = vpop.permute.xlu0 %891
      %893 = vrot.lane.b32.xlu0 %v719, 111
      %v894 = vpop.permute.xlu0 %893
      %v895 = vsel %vm601, %v892, %v894
      %v896 = vsel %vm601, %v894, %v892
      %v897 = vld [vmem:[%s604] ss:$8 sm:$0x3]
      %v899 = vlaneseq
      %v900 = vshrl.u32 %v899, 7
      %v901 = vsub.s32 0, %v900
      %v902 = vrot.slane %v897, %v901
      %v903 = vlaneseq
      %v904 = vshrl.u32 %v903, 7
      %v905 = vsub.s32 1, %v904
      %v906 = vrot.slane %v897, %v905
      %v909 = vmul.f32 %v895, %v902
      %v910 = vmul.f32 %v896, %v906
      %911 = vst [vmem:[#allocation2 + $0x80] sm:$0xff] %v909
      %912 = vst [vmem:[#allocation2 + $0x88] sm:$0xff] %v910
      %v913 = vld [vmem:[%s4] sm:$0xff]
      %v914 = vld [vmem:[#allocation2] sm:$0xff]
      %v915 = vld [vmem:[#allocation2 + $0x8] sm:$0xff]
      %v916 = vld [vmem:[#allocation2 + $0x10] sm:$0xff]
      %v917 = vld [vmem:[#allocation2 + $0x18] sm:$0xff]
      %v918 = vld [vmem:[#allocation2 + $0x20] sm:$0xff]
      %v919 = vld [vmem:[#allocation2 + $0x28] sm:$0xff]
      %v920 = vld [vmem:[#allocation2 + $0x30] sm:$0xff]
      %v921 = vld [vmem:[#allocation2 + $0x38] sm:$0xff]
      %v922 = vld [vmem:[#allocation2 + $0x40] sm:$0xff]
      %v923 = vld [vmem:[#allocation2 + $0x48] sm:$0xff]
      %v924 = vld [vmem:[#allocation2 + $0x50] sm:$0xff]
      %v925 = vld [vmem:[#allocation2 + $0x58] sm:$0xff]
      %v926 = vld [vmem:[#allocation2 + $0x60] sm:$0xff]
      %v927 = vld [vmem:[#allocation2 + $0x68] sm:$0xff]
      %v928 = vld [vmem:[#allocation2 + $0x70] sm:$0xff]
      %v929 = vld [vmem:[#allocation2 + $0x78] sm:$0xff]
      %v930 = vld [vmem:[#allocation2 + $0x80] sm:$0xff]
      %v931 = vld [vmem:[#allocation2 + $0x88] sm:$0xff]
      %v932 = vld [vmem:[%s5] sm:$0xff]
      %934 = vset.pattern.permute.xlu0 0
      %935 = vperm.xlu0 %934, %v932
      %v936 = vpop.permute.xlu0 %935
      %v939 = vsel %vm646, %v913, 0
      %941 = vmatprep.subr.mxu0 0.0
      %942 = vmatpush1.msra.mxu0 0.0
      %943 = vmatprep.subr.mxu0 0.0
      %944 = vmatpush1.msra.mxu0 0.0
      %945 = vmatprep.subr.mxu0 0.0
      %946 = vmatpush1.msra.mxu0 0.0
      %947 = vmatprep.subr.mxu0 0.0
      %948 = vmatpush1.msra.mxu0 0.0
      %949 = vmatprep.subr.mxu0 0.0
      %950 = vmatpush1.msra.mxu0 0.0
      %951 = vmatprep.subr.mxu0 0.0
      %952 = vmatpush1.msra.mxu0 0.0
      %953 = vmatprep.subr.mxu0 0.0
      %954 = vmatpush1.msra.mxu0 0.0
      %955 = vmatprep.subr.mxu0 %v931
      %956 = vmatpush1.msra.mxu0 %v930
      %957 = vmatprep.subr.mxu0 %v929
      %958 = vmatpush1.msra.mxu0 %v928
      %959 = vmatprep.subr.mxu0 %v927
      %960 = vmatpush1.msra.mxu0 %v926
      %961 = vmatprep.subr.mxu0 %v925
      %962 = vmatpush1.msra.mxu0 %v924
      %963 = vmatprep.subr.mxu0 %v923
      %964 = vmatpush1.msra.mxu0 %v922
      %965 = vmatprep.subr.mxu0 %v921
      %966 = vmatpush1.msra.mxu0 %v920
      %967 = vmatprep.subr.mxu0 %v919
      %968 = vmatpush1.msra.mxu0 %v918
      %969 = vmatprep.subr.mxu0 %v917
      %970 = vmatpush1.msra.mxu0 %v916
      %971 = vmatprep.subr.mxu0 %v915
      %972 = vmatpush1.msra.mxu0 %v914
      %973 = vmatprep.subr.mxu0 0.0
      %974 = vmatpush2.msra.mxu0 0.0
      %975 = vmatprep.subr.mxu0 0.0
      %976 = vmatpush2.msra.mxu0 0.0
      %977 = vmatprep.subr.mxu0 0.0
      %978 = vmatpush2.msra.mxu0 0.0
      %979 = vmatprep.subr.mxu0 0.0
      %980 = vmatpush2.msra.mxu0 0.0
      %981 = vmatprep.subr.mxu0 0.0
      %982 = vmatpush2.msra.mxu0 0.0
      %983 = vmatprep.subr.mxu0 0.0
      %984 = vmatpush2.msra.mxu0 0.0
      %985 = vmatprep.subr.mxu0 0.0
      %986 = vmatpush2.msra.mxu0 0.0
      %987 = vmatprep.subr.mxu0 0.0
      %988 = vmatpush2.msra.mxu0 0.0
      %989 = vmatprep.subr.mxu0 0.0
      %990 = vmatpush2.msra.mxu0 0.0
      %991 = vmatprep.subr.mxu0 0.0
      %992 = vmatpush2.msra.mxu0 0.0
      %993 = vmatprep.subr.mxu0 0.0
      %994 = vmatpush2.msra.mxu0 0.0
      %995 = vmatprep.subr.mxu0 0.0
      %996 = vmatpush2.msra.mxu0 0.0
      %997 = vmatprep.subr.mxu0 0.0
      %998 = vmatpush2.msra.mxu0 0.0
      %999 = vmatprep.subr.mxu0 0.0
      %1000 = vmatpush2.msra.mxu0 0.0
      %1001 = vmatprep.subr.mxu0 0.0
      %1002 = vmatpush2.msra.mxu0 0.0
      %1003 = vmatprep.subr.mxu0 0.0
      %1004 = vmatpush2.msra.mxu0 0.0
      %1005 = vmatprep.mubr.f32.mxu0 0.0
      %1006 = vmatmul.mubr.f32.gmra.mxu0 %v939
      %v1007 = vpop.f32.mrf.mxu0
      %v1008 = vadd.f32 %v936, %v1007
      %v1009 = vpop.f32.mrf.mxu0
      %v1010 = vadd.f32 %v936, %v1009
      %1011 = vdwg.mxu0
      %v1012 = vmax.f32 %v1008, 0.0
      %v1013 = vmax.f32 %v1010, 0.0
      %1014 = vrot.lane.b32.xlu0 %v1012, 17
      %v1015 = vpop.permute.xlu0 %1014
      %1016 = vrot.lane.b32.xlu0 %v1013, 17
      %v1017 = vpop.permute.xlu0 %1016
      %v1018 = vsel %vm415, %v1015, %v1017
      %v1019 = vsel %vm415, %v1017, %v1015
      %v1020 = vld [vmem:[%s1] ss:$8 sm:$0x3]
      %v1022 = vlaneseq
      %v1023 = vshrl.u32 %v1022, 7
      %v1024 = vsub.s32 0, %v1023
      %v1025 = vrot.slane %v1020, %v1024
      %v1026 = vlaneseq
      %v1027 = vshrl.u32 %v1026, 7
      %v1028 = vsub.s32 1, %v1027
      %v1029 = vrot.slane %v1020, %v1028
      %v1032 = vmul.f32 %v1019, %v1025
      %v1033 = vmul.f32 %v1018, %v1029
      %1034 = vst [vmem:[#allocation2] sm:$0xff] %v1032
      %1035 = vst [vmem:[#allocation2 + $0x8] sm:$0xff] %v1033
      %1036 = vrot.lane.b32.xlu0 %v1012, 16
      %v1037 = vpop.permute.xlu0 %1036
      %1038 = vrot.lane.b32.xlu0 %v1013, 16
      %v1039 = vpop.permute.xlu0 %1038
      %v1040 = vsel %vm438, %v1037, %v1039
      %v1041 = vsel %vm438, %v1039, %v1037
      %v1042 = vld [vmem:[%s441] ss:$8 sm:$0x3]
      %v1044 = vlaneseq
      %v1045 = vshrl.u32 %v1044, 7
      %v1046 = vsub.s32 0, %v1045
      %v1047 = vrot.slane %v1042, %v1046
      %v1048 = vlaneseq
      %v1049 = vshrl.u32 %v1048, 7
      %v1050 = vsub.s32 1, %v1049
      %v1051 = vrot.slane %v1042, %v1050
      %v1054 = vmul.f32 %v1041, %v1047
      %v1055 = vmul.f32 %v1040, %v1051
      %1056 = vst [vmem:[#allocation2 + $0x10] sm:$0xff] %v1054
      %1057 = vst [vmem:[#allocation2 + $0x18] sm:$0xff] %v1055
      %1058 = vrot.lane.b32.xlu0 %v1012, 15
      %v1059 = vpop.permute.xlu0 %1058
      %1060 = vrot.lane.b32.xlu0 %v1013, 15
      %v1061 = vpop.permute.xlu0 %1060
      %v1062 = vsel %vm462, %v1059, %v1061
      %v1063 = vsel %vm462, %v1061, %v1059
      %v1064 = vld [vmem:[%s465] ss:$8 sm:$0x3]
      %v1066 = vlaneseq
      %v1067 = vshrl.u32 %v1066, 7
      %v1068 = vsub.s32 0, %v1067
      %v1069 = vrot.slane %v1064, %v1068
      %v1070 = vlaneseq
      %v1071 = vshrl.u32 %v1070, 7
      %v1072 = vsub.s32 1, %v1071
      %v1073 = vrot.slane %v1064, %v1072
      %v1076 = vmul.f32 %v1063, %v1069
      %v1077 = vmul.f32 %v1062, %v1073
      %1078 = vst [vmem:[#allocation2 + $0x20] sm:$0xff] %v1076
      %1079 = vst [vmem:[#allocation2 + $0x28] sm:$0xff] %v1077
      %1080 = vrot.lane.b32.xlu0 %v1012, 1
      %v1081 = vpop.permute.xlu0 %1080
      %1082 = vrot.lane.b32.xlu0 %v1013, 1
      %v1083 = vpop.permute.xlu0 %1082
      %v1084 = vsel %vm486, %v1081, %v1083
      %v1085 = vsel %vm486, %v1083, %v1081
      %v1086 = vld [vmem:[%s489] ss:$8 sm:$0x3]
      %v1088 = vlaneseq
      %v1089 = vshrl.u32 %v1088, 7
      %v1090 = vsub.s32 0, %v1089
      %v1091 = vrot.slane %v1086, %v1090
      %v1092 = vlaneseq
      %v1093 = vshrl.u32 %v1092, 7
      %v1094 = vsub.s32 1, %v1093
      %v1095 = vrot.slane %v1086, %v1094
      %v1098 = vmul.f32 %v1085, %v1091
      %v1099 = vmul.f32 %v1084, %v1095
      %1100 = vst [vmem:[#allocation2 + $0x30] sm:$0xff] %v1098
      %1101 = vst [vmem:[#allocation2 + $0x38] sm:$0xff] %v1099
      %v1102 = vld [vmem:[%s506] ss:$8 sm:$0x3]
      %v1104 = vlaneseq
      %v1105 = vshrl.u32 %v1104, 7
      %v1106 = vsub.s32 0, %v1105
      %v1107 = vrot.slane %v1102, %v1106
      %v1108 = vlaneseq
      %v1109 = vshrl.u32 %v1108, 7
      %v1110 = vsub.s32 1, %v1109
      %v1111 = vrot.slane %v1102, %v1110
      %v1114 = vmul.f32 %v1012, %v1107
      %v1115 = vmul.f32 %v1013, %v1111
      %1116 = vst [vmem:[#allocation2 + $0x40] sm:$0xff] %v1114
      %1117 = vst [vmem:[#allocation2 + $0x48] sm:$0xff] %v1115
      %1118 = vrot.lane.b32.xlu0 %v1012, 127
      %v1119 = vpop.permute.xlu0 %1118
      %1120 = vrot.lane.b32.xlu0 %v1013, 127
      %v1121 = vpop.permute.xlu0 %1120
      %v1122 = vsel %vm529, %v1119, %v1121
      %v1123 = vsel %vm529, %v1121, %v1119
      %v1124 = vld [vmem:[%s532] ss:$8 sm:$0x3]
      %v1126 = vlaneseq
      %v1127 = vshrl.u32 %v1126, 7
      %v1128 = vsub.s32 0, %v1127
      %v1129 = vrot.slane %v1124, %v1128
      %v1130 = vlaneseq
      %v1131 = vshrl.u32 %v1130, 7
      %v1132 = vsub.s32 1, %v1131
      %v1133 = vrot.slane %v1124, %v1132
      %v1136 = vmul.f32 %v1122, %v1129
      %v1137 = vmul.f32 %v1123, %v1133
      %1138 = vst [vmem:[#allocation2 + $0x50] sm:$0xff] %v1136
      %1139 = vst [vmem:[#allocation2 + $0x58] sm:$0xff] %v1137
      %1140 = vrot.lane.b32.xlu0 %v1012, 113
      %v1141 = vpop.permute.xlu0 %1140
      %1142 = vrot.lane.b32.xlu0 %v1013, 113
      %v1143 = vpop.permute.xlu0 %1142
      %v1144 = vsel %vm553, %v1141, %v1143
      %v1145 = vsel %vm553, %v1143, %v1141
      %v1146 = vld [vmem:[%s556] ss:$8 sm:$0x3]
      %v1148 = vlaneseq
      %v1149 = vshrl.u32 %v1148, 7
      %v1150 = vsub.s32 0, %v1149
      %v1151 = vrot.slane %v1146, %v1150
      %v1152 = vlaneseq
      %v1153 = vshrl.u32 %v1152, 7
      %v1154 = vsub.s32 1, %v1153
      %v1155 = vrot.slane %v1146, %v1154
      %v1158 = vmul.f32 %v1144, %v1151
      %v1159 = vmul.f32 %v1145, %v1155
      %1160 = vst [vmem:[#allocation2 + $0x60] sm:$0xff] %v1158
      %1161 = vst [vmem:[#allocation2 + $0x68] sm:$0xff] %v1159
      %1162 = vrot.lane.b32.xlu0 %v1012, 112
      %v1163 = vpop.permute.xlu0 %1162
      %1164 = vrot.lane.b32.xlu0 %v1013, 112
      %v1165 = vpop.permute.xlu0 %1164
      %v1166 = vsel %vm577, %v1163, %v1165
      %v1167 = vsel %vm577, %v1165, %v1163
      %v1168 = vld [vmem:[%s580] ss:$8 sm:$0x3]
      %v1170 = vlaneseq
      %v1171 = vshrl.u32 %v1170, 7
      %v1172 = vsub.s32 0, %v1171
      %v1173 = vrot.slane %v1168, %v1172
      %v1174 = vlaneseq
      %v1175 = vshrl.u32 %v1174, 7
      %v1176 = vsub.s32 1, %v1175
      %v1177 = vrot.slane %v1168, %v1176
      %v1180 = vmul.f32 %v1166, %v1173
      %v1181 = vmul.f32 %v1167, %v1177
      %1182 = vst [vmem:[#allocation2 + $0x70] sm:$0xff] %v1180
      %1183 = vst [vmem:[#allocation2 + $0x78] sm:$0xff] %v1181
      %1184 = vrot.lane.b32.xlu0 %v1012, 111
      %v1185 = vpop.permute.xlu0 %1184
      %1186 = vrot.lane.b32.xlu0 %v1013, 111
      %v1187 = vpop.permute.xlu0 %1186
      %v1188 = vsel %vm601, %v1185, %v1187
      %v1189 = vsel %vm601, %v1187, %v1185
      %v1190 = vld [vmem:[%s604] ss:$8 sm:$0x3]
      %v1192 = vlaneseq
      %v1193 = vshrl.u32 %v1192, 7
      %v1194 = vsub.s32 0, %v1193
      %v1195 = vrot.slane %v1190, %v1194
      %v1196 = vlaneseq
      %v1197 = vshrl.u32 %v1196, 7
      %v1198 = vsub.s32 1, %v1197
      %v1199 = vrot.slane %v1190, %v1198
      %v1202 = vmul.f32 %v1188, %v1195
      %v1203 = vmul.f32 %v1189, %v1199
      %1204 = vst [vmem:[#allocation2 + $0x80] sm:$0xff] %v1202
      %1205 = vst [vmem:[#allocation2 + $0x88] sm:$0xff] %v1203
      %v1206 = vld [vmem:[%s6] sm:$0xff]
      %v1207 = vld [vmem:[%s6 + $0x8] sm:$0xff]
      %v1208 = vld [vmem:[#allocation2] sm:$0xff]
      %v1209 = vld [vmem:[#allocation2 + $0x8] sm:$0xff]
      %v1210 = vld [vmem:[#allocation2 + $0x10] sm:$0xff]
      %v1211 = vld [vmem:[#allocation2 + $0x18] sm:$0xff]
      %v1212 = vld [vmem:[#allocation2 + $0x20] sm:$0xff]
      %v1213 = vld [vmem:[#allocation2 + $0x28] sm:$0xff]
      %v1214 = vld [vmem:[#allocation2 + $0x30] sm:$0xff]
      %v1215 = vld [vmem:[#allocation2 + $0x38] sm:$0xff]
      %v1216 = vld [vmem:[#allocation2 + $0x40] sm:$0xff]
      %v1217 = vld [vmem:[#allocation2 + $0x48] sm:$0xff]
      %v1218 = vld [vmem:[#allocation2 + $0x50] sm:$0xff]
      %v1219 = vld [vmem:[#allocation2 + $0x58] sm:$0xff]
      %v1220 = vld [vmem:[#allocation2 + $0x60] sm:$0xff]
      %v1221 = vld [vmem:[#allocation2 + $0x68] sm:$0xff]
      %v1222 = vld [vmem:[#allocation2 + $0x70] sm:$0xff]
      %v1223 = vld [vmem:[#allocation2 + $0x78] sm:$0xff]
      %v1224 = vld [vmem:[#allocation2 + $0x80] sm:$0xff]
      %v1225 = vld [vmem:[#allocation2 + $0x88] sm:$0xff]
      %v1226 = vld [vmem:[%s7] sm:$0xff]
      %v1227 = vld [vmem:[%s7 + $0x8] sm:$0xff]
      %1229 = vset.pattern.permute.xlu0 0
      %1230 = vperm.xlu0 %1229, %v1226
      %v1231 = vpop.permute.xlu0 %1230
      %1234 = vset.pattern.permute.xlu0 0
      %1235 = vperm.xlu0 %1234, %v1227
      %v1236 = vpop.permute.xlu0 %1235
      %v1239 = vsel %vm646, %v1206, 0
      %v1242 = vsel %vm646, %v1207, 0
      %1244 = vmatprep.subr.mxu0 0.0
      %1245 = vmatpush1.msra.mxu0 0.0
      %1246 = vmatprep.subr.mxu0 0.0
      %1247 = vmatpush1.msra.mxu0 0.0
      %1248 = vmatprep.subr.mxu0 0.0
      %1249 = vmatpush1.msra.mxu0 0.0
      %1250 = vmatprep.subr.mxu0 0.0
      %1251 = vmatpush1.msra.mxu0 0.0
      %1252 = vmatprep.subr.mxu0 0.0
      %1253 = vmatpush1.msra.mxu0 0.0
      %1254 = vmatprep.subr.mxu0 0.0
      %1255 = vmatpush1.msra.mxu0 0.0
      %1256 = vmatprep.subr.mxu0 0.0
      %1257 = vmatpush1.msra.mxu0 0.0
      %1258 = vmatprep.subr.mxu0 %v1225
      %1259 = vmatpush1.msra.mxu0 %v1224
      %1260 = vmatprep.subr.mxu0 %v1223
      %1261 = vmatpush1.msra.mxu0 %v1222
      %1262 = vmatprep.subr.mxu0 %v1221
      %1263 = vmatpush1.msra.mxu0 %v1220
      %1264 = vmatprep.subr.mxu0 %v1219
      %1265 = vmatpush1.msra.mxu0 %v1218
      %1266 = vmatprep.subr.mxu0 %v1217
      %1267 = vmatpush1.msra.mxu0 %v1216
      %1268 = vmatprep.subr.mxu0 %v1215
      %1269 = vmatpush1.msra.mxu0 %v1214
      %1270 = vmatprep.subr.mxu0 %v1213
      %1271 = vmatpush1.msra.mxu0 %v1212
      %1272 = vmatprep.subr.mxu0 %v1211
      %1273 = vmatpush1.msra.mxu0 %v1210
      %1274 = vmatprep.subr.mxu0 %v1209
      %1275 = vmatpush1.msra.mxu0 %v1208
      %1276 = vmatprep.subr.mxu0 0.0
      %1277 = vmatpush2.msra.mxu0 0.0
      %1278 = vmatprep.subr.mxu0 0.0
      %1279 = vmatpush2.msra.mxu0 0.0
      %1280 = vmatprep.subr.mxu0 0.0
      %1281 = vmatpush2.msra.mxu0 0.0
      %1282 = vmatprep.subr.mxu0 0.0
      %1283 = vmatpush2.msra.mxu0 0.0
      %1284 = vmatprep.subr.mxu0 0.0
      %1285 = vmatpush2.msra.mxu0 0.0
      %1286 = vmatprep.subr.mxu0 0.0
      %1287 = vmatpush2.msra.mxu0 0.0
      %1288 = vmatprep.subr.mxu0 0.0
      %1289 = vmatpush2.msra.mxu0 0.0
      %1290 = vmatprep.subr.mxu0 0.0
      %1291 = vmatpush2.msra.mxu0 0.0
      %1292 = vmatprep.subr.mxu0 0.0
      %1293 = vmatpush2.msra.mxu0 0.0
      %1294 = vmatprep.subr.mxu0 0.0
      %1295 = vmatpush2.msra.mxu0 0.0
      %1296 = vmatprep.subr.mxu0 0.0
      %1297 = vmatpush2.msra.mxu0 0.0
      %1298 = vmatprep.subr.mxu0 0.0
      %1299 = vmatpush2.msra.mxu0 0.0
      %1300 = vmatprep.subr.mxu0 0.0
      %1301 = vmatpush2.msra.mxu0 0.0
      %1302 = vmatprep.subr.mxu0 0.0
      %1303 = vmatpush2.msra.mxu0 0.0
      %1304 = vmatprep.subr.mxu0 0.0
      %1305 = vmatpush2.msra.mxu0 0.0
      %1306 = vmatprep.subr.mxu0 0.0
      %1307 = vmatpush2.msra.mxu0 0.0
      %1308 = vmatprep.mubr.f32.mxu0 0.0
      %1309 = vmatmul.mubr.f32.gmra.mxu0 %v1239
      %v1310 = vpop.f32.mrf.mxu0
      %v1311 = vadd.f32 %v1231, %v1310
      %v1312 = vpop.f32.mrf.mxu0
      %v1313 = vadd.f32 %v1231, %v1312
      %1314 = vmatprep.mubr.f32.mxu0 0.0
      %1315 = vmatmul.mubr.f32.gmra.mxu0 %v1242
      %v1316 = vpop.f32.mrf.mxu0
      %v1317 = vadd.f32 %v1236, %v1316
      %v1318 = vpop.f32.mrf.mxu0
      %v1319 = vadd.f32 %v1236, %v1318
      %1320 = vdwg.mxu0
      %v1321 = vld [vmem:[%s8] sm:$0x1f]
      %v1322 = vld [vmem:[%s9] sm:$0x1f]
      %1324 = vset.pattern.permute.xlu0 0
      %1325 = vperm.xlu0 %1324, %v1322
      %v1326 = vpop.permute.xlu0 %1325
      %vm1328 = vcmask 130048
      %v1330 = vsel %vm1328, %v1321, 0
      %1332 = vmatprep.subr.mxu0 0.0
      %1333 = vmatpush1.msra.mxu0 0.0
      %1334 = vmatprep.subr.mxu0 0.0
      %1335 = vmatpush1.msra.mxu0 0.0
      %1336 = vmatprep.subr.mxu0 0.0
      %1337 = vmatpush1.msra.mxu0 0.0
      %1338 = vmatprep.subr.mxu0 0.0
      %1339 = vmatpush1.msra.mxu0 0.0
      %1340 = vmatprep.subr.mxu0 0.0
      %1341 = vmatpush1.msra.mxu0 0.0
      %1342 = vmatprep.subr.mxu0 0.0
      %1343 = vmatpush1.msra.mxu0 0.0
      %1344 = vmatprep.subr.mxu0 0.0
      %1345 = vmatpush1.msra.mxu0 0.0
      %1346 = vmatprep.subr.mxu0 0.0
      %1347 = vmatpush1.msra.mxu0 0.0
      %1348 = vmatprep.subr.mxu0 0.0
      %1349 = vmatpush1.msra.mxu0 0.0
      %1350 = vmatprep.subr.mxu0 0.0
      %1351 = vmatpush1.msra.mxu0 0.0
      %1352 = vmatprep.subr.mxu0 0.0
      %1353 = vmatpush1.msra.mxu0 0.0
      %1354 = vmatprep.subr.mxu0 0.0
      %1355 = vmatpush1.msra.mxu0 0.0
      %1356 = vmatprep.subr.mxu0 0.0
      %1357 = vmatpush1.msra.mxu0 0.0
      %1358 = vmatprep.subr.mxu0 0.0
      %1359 = vmatpush1.msra.mxu0 0.0
      %1360 = vmatprep.subr.mxu0 %v1319
      %1361 = vmatpush1.msra.mxu0 %v1317
      %1362 = vmatprep.subr.mxu0 %v1313
      %1363 = vmatpush1.msra.mxu0 %v1311
      %1364 = vmatprep.subr.mxu0 0.0
      %1365 = vmatpush2.msra.mxu0 0.0
      %1366 = vmatprep.subr.mxu0 0.0
      %1367 = vmatpush2.msra.mxu0 0.0
      %1368 = vmatprep.subr.mxu0 0.0
      %1369 = vmatpush2.msra.mxu0 0.0
      %1370 = vmatprep.subr.mxu0 0.0
      %1371 = vmatpush2.msra.mxu0 0.0
      %1372 = vmatprep.subr.mxu0 0.0
      %1373 = vmatpush2.msra.mxu0 0.0
      %1374 = vmatprep.subr.mxu0 0.0
      %1375 = vmatpush2.msra.mxu0 0.0
      %1376 = vmatprep.subr.mxu0 0.0
      %1377 = vmatpush2.msra.mxu0 0.0
      %1378 = vmatprep.subr.mxu0 0.0
      %1379 = vmatpush2.msra.mxu0 0.0
      %1380 = vmatprep.subr.mxu0 0.0
      %1381 = vmatpush2.msra.mxu0 0.0
      %1382 = vmatprep.subr.mxu0 0.0
      %1383 = vmatpush2.msra.mxu0 0.0
      %1384 = vmatprep.subr.mxu0 0.0
      %1385 = vmatpush2.msra.mxu0 0.0
      %1386 = vmatprep.subr.mxu0 0.0
      %1387 = vmatpush2.msra.mxu0 0.0
      %1388 = vmatprep.subr.mxu0 0.0
      %1389 = vmatpush2.msra.mxu0 0.0
      %1390 = vmatprep.subr.mxu0 0.0
      %1391 = vmatpush2.msra.mxu0 0.0
      %1392 = vmatprep.subr.mxu0 0.0
      %1393 = vmatpush2.msra.mxu0 0.0
      %1394 = vmatprep.subr.mxu0 0.0
      %1395 = vmatpush2.msra.mxu0 0.0
      %1396 = vmatprep.mubr.f32.mxu0 0.0
      %1397 = vmatmul.mubr.f32.gmra.mxu0 %v1330
      %v1398 = vpop.f32.mrf.mxu0
      %v1399 = vadd.f32 %v1326, %v1398
      %v1400 = vpop.f32.mrf.mxu0
      %v1401 = vadd.f32 %v1326, %v1400
      %1402 = vdwg.mxu0
      %v1403 = vld [vmem:[%s10] sm:$0xff]
      %v1404 = vld [vmem:[%s10 + $0x8] sm:$0xff]
      %v1405 = vld [vmem:[%s10 + $0x10] sm:$0xff]
      %v1406 = vld [vmem:[%s10 + $0x18] sm:$0xff]
      %v1407 = vld [vmem:[%s10 + $0x20] sm:$0xff]
      %v1408 = vld [vmem:[%s10 + $0x28] sm:$0xff]
      %v1409 = vld [vmem:[%s10 + $0x30] sm:$0xff]
      %v1410 = vld [vmem:[%s10 + $0x38] sm:$0xff]
      %v1411 = vld [vmem:[%s10 + $0x40] sm:$0xff]
      %v1412 = vld [vmem:[%s10 + $0x48] sm:$0xff]
      %v1413 = vld [vmem:[%s10 + $0x50] sm:$0xff]
      %v1414 = vld [vmem:[%s10 + $0x58] sm:$0xff]
      %v1415 = vld [vmem:[%s10 + $0x60] sm:$0xff]
      %v1416 = vld [vmem:[%s10 + $0x68] sm:$0xff]
      %v1417 = vld [vmem:[%s10 + $0x70] sm:$0xff]
      %v1418 = vld [vmem:[%s10 + $0x78] sm:$0xff]
      %v1419 = vld [vmem:[%s10 + $0x80] sm:$0xff]
      %v1420 = vld [vmem:[%s10 + $0x88] sm:$0xff]
      %v1421 = vld [vmem:[%s10 + $0x90] sm:$0xff]
      %v1422 = vld [vmem:[%s10 + $0x98] sm:$0xff]
      %v1423 = vld [vmem:[%s10 + $0xa0] sm:$0xff]
      %v1424 = vld [vmem:[%s10 + $0xa8] sm:$0xff]
      %v1425 = vld [vmem:[%s10 + $0xb0] sm:$0xff]
      %v1426 = vld [vmem:[%s10 + $0xb8] sm:$0xff]
      %v1427 = vld [vmem:[%s10 + $0xc0] sm:$0xff]
      %v1428 = vld [vmem:[%s10 + $0xc8] sm:$0xff]
      %v1429 = vld [vmem:[%s10 + $0xd0] sm:$0xff]
      %v1430 = vld [vmem:[%s10 + $0xd8] sm:$0xff]
      %v1431 = vld [vmem:[%s10 + $0xe0] sm:$0xff]
      %v1432 = vld [vmem:[%s10 + $0xe8] sm:$0xff]
      %v1433 = vld [vmem:[%s10 + $0xf0] sm:$0xff]
      %v1434 = vld [vmem:[%s10 + $0xf8] sm:$0xff]
      %v1435 = vld [vmem:[%s10 + $0x100] sm:$0xff]
      %v1436 = vld [vmem:[%s10 + $0x108] sm:$0xff]
      %v1437 = vld [vmem:[%s10 + $0x110] sm:$0xff]
      %v1438 = vld [vmem:[%s10 + $0x118] sm:$0xff]
      %v1439 = vld [vmem:[%s10 + $0x120] sm:$0xff]
      %v1440 = vld [vmem:[%s10 + $0x128] sm:$0xff]
      %v1441 = vld [vmem:[%s10 + $0x130] sm:$0xff]
      %v1442 = vld [vmem:[%s10 + $0x138] sm:$0xff]
      %v1443 = vld [vmem:[%s10 + $0x140] sm:$0xff]
      %v1444 = vld [vmem:[%s10 + $0x148] sm:$0xff]
      %v1445 = vld [vmem:[%s10 + $0x150] sm:$0xff]
      %v1446 = vld [vmem:[%s10 + $0x158] sm:$0xff]
      %v1447 = vld [vmem:[%s10 + $0x160] sm:$0xff]
      %v1448 = vld [vmem:[%s10 + $0x168] sm:$0xff]
      %v1449 = vld [vmem:[%s10 + $0x170] sm:$0xff]
      %v1450 = vld [vmem:[%s10 + $0x178] sm:$0xff]
      %v1451 = vld [vmem:[%s10 + $0x180] sm:$0xff]
      %v1452 = vld [vmem:[%s10 + $0x188] sm:$0xff]
      %v1453 = vld [vmem:[%s10 + $0x190] sm:$0xff]
      %v1454 = vld [vmem:[%s10 + $0x198] sm:$0xff]
      %v1455 = vld [vmem:[%s10 + $0x1a0] sm:$0xff]
      %v1456 = vld [vmem:[%s10 + $0x1a8] sm:$0xff]
      %v1457 = vld [vmem:[%s10 + $0x1b0] sm:$0xff]
      %v1458 = vld [vmem:[%s10 + $0x1b8] sm:$0xff]
      %v1459 = vld [vmem:[%s10 + $0x1c0] sm:$0xff]
      %v1460 = vld [vmem:[%s10 + $0x1c8] sm:$0xff]
      %v1461 = vld [vmem:[%s10 + $0x1d0] sm:$0xff]
      %v1462 = vld [vmem:[%s10 + $0x1d8] sm:$0xff]
      %v1463 = vld [vmem:[%s10 + $0x1e0] sm:$0xff]
      %v1464 = vld [vmem:[%s10 + $0x1e8] sm:$0xff]
      %v1465 = vld [vmem:[%s10 + $0x1f0] sm:$0xff]
      %v1466 = vld [vmem:[%s10 + $0x1f8] sm:$0xff]
      %1467 = vmatprep.subr.mxu0 %v1434
      %1468 = vmatpush1.msra.mxu0 %v1433
      %1469 = vmatprep.subr.mxu0 %v1432
      %1470 = vmatpush1.msra.mxu0 %v1431
      %1471 = vmatprep.subr.mxu0 %v1430
      %1472 = vmatpush1.msra.mxu0 %v1429
      %1473 = vmatprep.subr.mxu0 %v1428
      %1474 = vmatpush1.msra.mxu0 %v1427
      %1475 = vmatprep.subr.mxu0 %v1426
      %1476 = vmatpush1.msra.mxu0 %v1425
      %1477 = vmatprep.subr.mxu0 %v1424
      %1478 = vmatpush1.msra.mxu0 %v1423
      %1479 = vmatprep.subr.mxu0 %v1422
      %1480 = vmatpush1.msra.mxu0 %v1421
      %1481 = vmatprep.subr.mxu0 %v1420
      %1482 = vmatpush1.msra.mxu0 %v1419
      %1483 = vmatprep.subr.mxu0 %v1418
      %1484 = vmatpush1.msra.mxu0 %v1417
      %1485 = vmatprep.subr.mxu0 %v1416
      %1486 = vmatpush1.msra.mxu0 %v1415
      %1487 = vmatprep.subr.mxu0 %v1414
      %1488 = vmatpush1.msra.mxu0 %v1413
      %1489 = vmatprep.subr.mxu0 %v1412
      %1490 = vmatpush1.msra.mxu0 %v1411
      %1491 = vmatprep.subr.mxu0 %v1410
      %1492 = vmatpush1.msra.mxu0 %v1409
      %1493 = vmatprep.subr.mxu0 %v1408
      %1494 = vmatpush1.msra.mxu0 %v1407
      %1495 = vmatprep.subr.mxu0 %v1406
      %1496 = vmatpush1.msra.mxu0 %v1405
      %1497 = vmatprep.subr.mxu0 %v1404
      %1498 = vmatpush1.msra.mxu0 %v1403
      %1499 = vmatprep.subr.mxu0 %v1466
      %1500 = vmatpush2.msra.mxu0 %v1465
      %1501 = vmatprep.subr.mxu0 %v1464
      %1502 = vmatpush2.msra.mxu0 %v1463
      %1503 = vmatprep.subr.mxu0 %v1462
      %1504 = vmatpush2.msra.mxu0 %v1461
      %1505 = vmatprep.subr.mxu0 %v1460
      %1506 = vmatpush2.msra.mxu0 %v1459
      %1507 = vmatprep.subr.mxu0 %v1458
      %1508 = vmatpush2.msra.mxu0 %v1457
      %1509 = vmatprep.subr.mxu0 %v1456
      %1510 = vmatpush2.msra.mxu0 %v1455
      %1511 = vmatprep.subr.mxu0 %v1454
      %1512 = vmatpush2.msra.mxu0 %v1453
      %1513 = vmatprep.subr.mxu0 %v1452
      %1514 = vmatpush2.msra.mxu0 %v1451
      %1515 = vmatprep.subr.mxu0 %v1450
      %1516 = vmatpush2.msra.mxu0 %v1449
      %1517 = vmatprep.subr.mxu0 %v1448
      %1518 = vmatpush2.msra.mxu0 %v1447
      %1519 = vmatprep.subr.mxu0 %v1446
      %1520 = vmatpush2.msra.mxu0 %v1445
      %1521 = vmatprep.subr.mxu0 %v1444
      %1522 = vmatpush2.msra.mxu0 %v1443
      %1523 = vmatprep.subr.mxu0 %v1442
      %1524 = vmatpush2.msra.mxu0 %v1441
      %1525 = vmatprep.subr.mxu0 %v1440
      %1526 = vmatpush2.msra.mxu0 %v1439
      %1527 = vmatprep.subr.mxu0 %v1438
      %1528 = vmatpush2.msra.mxu0 %v1437
      %1529 = vmatprep.subr.mxu0 %v1436
      %1530 = vmatpush2.msra.mxu0 %v1435
      %1531 = vmatprep.mubr.f32.mxu0 %v1401
      %1532 = vmatmul.mubr.f32.gmra.mxu0 %v1399
      %v1533 = vpop.f32.mrf.mxu0
      %v1534 = vadd.f32 0.0, %v1533
      %v1535 = vpop.f32.mrf.mxu0
      %v1536 = vadd.f32 0.0, %v1535
      %1537 = vdwg.mxu0
      %1538 = vst [vmem:[%s386] sm:$0x1f] %v1534
      %1539 = vst [vmem:[%s386 + $0x8] sm:$0x1f] %v1536
      %p1540 = scmp.lt.s32.totalorder %s22, 1
      %s1541 = scalar_select %p1540, %s22, 1
      %s1542 = smul.addr %s1541, 2
      %s1543 = smul.addr %s1542, 8
      %s1544 = scalar_lea.vmem %s11, %s1543
      // Predicated region
      $region65: #{dmodel_forward.1} parent=63 // pred_check
        %p1545 = pneg %p276
      $region66: #{dmodel_forward.1} parent=63 // pred_check_branch
        %1547 = sbr.rel (%p1545) target = $region68
      $region67: #{dmodel_forward.1} parent=63 // pred_region
        _
      $region68: #{dmodel_forward.1} parent=63 // pred_fallthru
        _
    $region64: #{dmodel_forward.1} parent=5 // pred_fallthru
      _
    %p1548 = scmp.le.s32.totalorder 2, %s17
    // Predicated region
    $region69: #{dmodel_forward.1} parent=5 // pred_check
      %p1549 = pneg %p1548
    $region70: #{dmodel_forward.1} parent=5 // pred_check_branch
      %1551 = sbr.rel (%p1549) target = $region72
    $region71: #{dmodel_forward.1} parent=5 // pred_region
      %s1552 = ssub.s32 %s17, 2
      // Predicated region
      $region73: #{dmodel_forward.1} parent=71 // pred_check
        %p1553 = pneg %p282
      $region74: #{dmodel_forward.1} parent=71 // pred_check_branch
        %1555 = sbr.rel (%p1553) target = $region76
      $region75: #{dmodel_forward.1} parent=71 // pred_region
        %p1556 = scmp.lt.s32.totalorder %s23, 1
        %s1557 = scalar_select %p1556, %s23, 1
        %s1558 = smul.addr %s1557, 2
        %s1559 = smul.addr %s1558, 8
        %s1560 = scalar_lea.vmem %s11, %s1559
      $region76: #{dmodel_forward.1} parent=71 // pred_fallthru
        _
    $region72: #{dmodel_forward.1} parent=5 // pred_fallthru
      _
  $region6: #{dmodel_forward.1} parent=0 // loop_footer
    %s21 = sadd.s32 1, %s17
  $region7: #{dmodel_forward.1} parent=0 // loop_footer_branch
    %16 = sbr.rel target = $region3
  $region8: #{dmodel_forward.1} parent=0 // loop_exit
    _

</llo_original>
